<compile_context>
chip_gen: v7x
topology: tpu7x:2x2x1
jax: 0.10.0
libtpu: 0.0.40
codegen_flags: <defaults>
</compile_context>

<pallas_src>
import functools
import math

import jax
import jax.numpy as jnp
from jax import lax
from jax.experimental import pallas as pl
from jax.experimental.pallas import tpu as pltpu

_BN_EPS = 1e-5
_NORM_EPS = 1e-12
_VMEM_LIMIT = 48 * 1024 * 1024          # safe on v5e/v6e (128 MiB) and v7x (64 MiB)
_TARGET_COLS = 8192                      # target lane-tile width
_VMEM_TILE_BUDGET = 24 * 1024 * 1024     # budget for in-kernel intermediates


# --------------------------------------------------------------------------
# fused whole-network kernel
# --------------------------------------------------------------------------
def _build_fused_kernel(cfg, seq_len):
    """cfg: dict with kernel_size, enc=[(dil, cout, has_wd)...], dec=[...]."""
    K = cfg["kernel_size"]
    enc_cfgs = tuple(cfg["enc"])
    dec_cfgs = tuple(cfg["dec"])
    n_enc, n_dec = len(enc_cfgs), len(dec_cfgs)

    # All tap shifts used by any block -> masks computed once, shared.
    shifts = sorted({j * d for (d, _, _) in (enc_cfgs + dec_cfgs)
                     for j in range(1, K)})

    def kernel(x_ref, *refs):
        enc_w = refs[0:3 * n_enc]
        we_ref, be_ref, wdec_ref, bdec_ref = refs[3 * n_enc:3 * n_enc + 4]
        dec_w = refs[3 * n_enc + 4:3 * n_enc + 4 + 3 * n_dec]
        dec_out_ref, enc_out_ref = refs[-2:]

        T = x_ref.shape[1]
        t = lax.broadcasted_iota(jnp.int32, (1, T), 1)
        if seq_len & (seq_len - 1) == 0:                 # power-of-2 L
            tmod = jnp.bitwise_and(t, seq_len - 1)
        else:
            tmod = t % seq_len
        masks = {s: tmod >= s for s in shifts}

        def dilated_im2col(h, dilation):
            # taps[j][:, t] = h[:, t - j*dilation], zeros for t (in-segment) < shift
            taps = [h]
            for j in range(1, K):
                s = j * dilation
                shifted = pltpu.roll(h, s, axis=1)
                taps.append(jnp.where(masks[s], shifted, 0.0))
            return jnp.concatenate(taps, axis=0)         # (K*Cin, T)

        def bn_relu(h, scale, shift, bn_first):
            if bn_first:                                  # decoder block
                return jnp.maximum(h * scale + shift, 0.0)
            return jnp.maximum(h, 0.0) * scale + shift    # encoder block

        def tcn_block(h, w1s_ref, w2_ref, vec_ref, dilation, cout, has_wd,
                      bn_first):
            vec = vec_ref[...]                            # (Cout, 7)
            b1, s1, t1 = vec[:, 0:1], vec[:, 1:2], vec[:, 2:3]
            b2, s2, t2 = vec[:, 3:4], vec[:, 4:5], vec[:, 5:6]
            bd = vec[:, 6:7]

            # conv1 + residual 1x1 conv fused in one MXU pass
            y = jnp.dot(w1s_ref[...], dilated_im2col(h, dilation),
                        preferred_element_type=jnp.float32)
            if has_wd:
                h1 = y[:cout, :] + b1
                res = y[cout:, :] + bd
            else:
                h1 = y + b1
                res = h                                    # identity residual

            z = bn_relu(h1, s1, t1, bn_first)
            z = jnp.dot(w2_ref[...], dilated_im2col(z, dilation),
                        preferred_element_type=jnp.float32) + b2
            z = bn_relu(z, s2, t2, bn_first)
            return jnp.maximum(z + res, 0.0)

        h = x_ref[...]                                     # (C0, T) f32

        # ---- encoder TCN stack ----
        for bi, (dil, cout, has_wd) in enumerate(enc_cfgs):
            w1s, w2, vec = enc_w[3 * bi:3 * bi + 3]
            h = tcn_block(h, w1s, w2, vec, dil, cout, has_wd, bn_first=False)

        # ---- bottleneck: Linear -> L2 normalize (over channels) -> Linear ----
        e = jnp.dot(we_ref[...], h, preferred_element_type=jnp.float32) + be_ref[...]
        nrm = jnp.sqrt(jnp.sum(e * e, axis=0, keepdims=True))
        e = e / jnp.maximum(nrm, _NORM_EPS)
        enc_out_ref[...] = e
        h = (jnp.dot(wdec_ref[...], e, preferred_element_type=jnp.float32)
             + bdec_ref[...])

        # ---- decoder TCN stack ----
        for bi, (dil, cout, has_wd) in enumerate(dec_cfgs):
            w1s, w2, vec = dec_w[3 * bi:3 * bi + 3]
            h = tcn_block(h, w1s, w2, vec, dil, cout, has_wd, bn_first=True)

        dec_out_ref[...] = h

    return kernel


# --------------------------------------------------------------------------
# tiling heuristic (lane-dense, VMEM-budgeted, megacore-friendly)
# --------------------------------------------------------------------------
def _choose_tiling(batch, seq_len, *, max_channels, kernel_size,
                   target_cols=_TARGET_COLS, vmem_budget=_VMEM_TILE_BUDGET):
    """Column tile must be a multiple of L (causal roll+mask validity) and of
    128 lanes (unmasked stores).  Returns (col_tile, padded_ncols)."""
    ncols = batch * seq_len
    unit = seq_len * 128 // math.gcd(seq_len, 128)       # lcm(L, 128)

    # rough per-column live-set estimate (activations + im2col + misc), f32
    bytes_per_col = 4 * max_channels * (kernel_size + 6)
    cap_units = max(1, vmem_budget // (bytes_per_col * unit))
    tgt_units = max(1, target_cols // unit)
    tile_units = min(cap_units, tgt_units)

    total_units = -(-ncols // unit)                      # cdiv
    if total_units >= 2 and tile_units >= total_units:
        tile_units = max(1, total_units // 2)            # >= 2 grid steps (2 TCs)
    tile_units = min(tile_units, total_units)

    col_tile = tile_units * unit
    n_tiles = -(-total_units // tile_units)
    padded_ncols = n_tiles * col_tile
    return col_tile, padded_ncols


def _full_spec(a):
    return pl.BlockSpec(a.shape, lambda i: (0, 0))


# --------------------------------------------------------------------------
# one-time weight packing (runs eagerly, OUTSIDE the jitted forward)
# --------------------------------------------------------------------------
def _bn_affine(gamma, beta, mean, var):
    scale = gamma / jnp.sqrt(var + _BN_EPS)
    return scale, beta - mean * scale


def _prep_block(p, K, transposed):
    """Returns (w1_stacked, w2_2d, vec, cout, has_wd) for one TemporalBlock."""
    if transposed:
        w1, w2 = p["w1"], p["w2"]            # (Cin, Cout, K), (Cout, Cout, K)
        cin, cout = w1.shape[0], w1.shape[1]
        # ConvTranspose (+ chomp): tap j has shift j*dil and uses w[:, :, j]^T
        w1_taps = [w1[:, :, j].T for j in range(K)]
        w2_taps = [w2[:, :, j].T for j in range(K)]
        wd = None if p["wd"] is None else p["wd"][:, :, 0].T
    else:
        w1, w2 = p["w1"], p["w2"]            # (Cout, Cin, K), (Cout, Cout, K)
        cout, cin = w1.shape[0], w1.shape[1]
        # causal conv: tap j has shift j*dil and uses torch weight index K-1-j
        w1_taps = [w1[:, :, K - 1 - j] for j in range(K)]
        w2_taps = [w2[:, :, K - 1 - j] for j in range(K)]
        wd = None if p["wd"] is None else p["wd"][:, :, 0]

    w1_2d = jnp.concatenate(w1_taps, axis=1)              # (Cout, K*Cin)
    w2_2d = jnp.concatenate(w2_taps, axis=1)              # (Cout, K*Cout)

    has_wd = wd is not None
    if has_wd:
        # residual weight occupies the tap-0 columns; other taps are zero
        wd_pad = jnp.pad(wd, ((0, 0), (0, (K - 1) * cin)))
        w1s = jnp.concatenate([w1_2d, wd_pad], axis=0)    # (2*Cout, K*Cin)
        bd = p["bd"]
    else:
        w1s = w1_2d
        bd = jnp.zeros((cout,), jnp.float32)

    s1, t1 = _bn_affine(p["gamma1"], p["beta1"], p["mean1"], p["var1"])
    s2, t2 = _bn_affine(p["gamma2"], p["beta2"], p["mean2"], p["var2"])
    vec = jnp.stack([p["b1"], s1, t1, p["b2"], s2, t2, bd], axis=1)  # (Cout, 7)

    return (w1s.astype(jnp.float32), w2_2d.astype(jnp.float32),
            vec.astype(jnp.float32), cout, has_wd)


def pack_params(params, *, kernel_size):
    """Pre-pack all weights (eager).  Returns (weights_tuple, static_cfg)."""
    K = kernel_size
    num_levels = len(params["enc"])
    weights = []
    enc_cfgs = []
    for i, p in enumerate(params["enc"]):
        w1s, w2_2d, vec, cout, has_wd = _prep_block(p, K, transposed=False)
        weights += [w1s, w2_2d, vec]
        enc_cfgs.append((2 ** i, cout, has_wd))

    e_dim, c_last = params["linear_enc_w"].shape
    weights += [params["linear_enc_w"].astype(jnp.float32),
                params["linear_enc_b"].reshape(e_dim, 1).astype(jnp.float32),
                params["linear_dec_w"].astype(jnp.float32),
                params["linear_dec_b"].reshape(c_last, 1).astype(jnp.float32)]

    dec_cfgs = []
    for i, p in enumerate(params["dec"]):
        w1s, w2_2d, vec, cout, has_wd = _prep_block(p, K, transposed=True)
        weights += [w1s, w2_2d, vec]
        dec_cfgs.append((2 ** (num_levels - (i + 1)), cout, has_wd))

    cfg = dict(kernel_size=K, enc=tuple(enc_cfgs), dec=tuple(dec_cfgs),
               e_dim=e_dim, c_last=c_last)
    return tuple(weights), cfg


# --------------------------------------------------------------------------
# full forward pass (single fused pallas_call)
# --------------------------------------------------------------------------
def tcnn_autoencoder_forward_packed(x_ncl, weights, *, cfg):
    """x_ncl: (B, num_inputs, L) f32.  Returns (decoded (B, num_inputs, L),
    encoded (B, L, output_size)), matching the torch module."""
    B, c0, L = x_ncl.shape
    ncols = B * L
    e_dim = cfg["e_dim"]
    num_out = cfg["dec"][-1][1]                           # == num_inputs

    max_ch = max([c for (_, c, _) in cfg["enc"]]
                 + [c for (_, c, _) in cfg["dec"]]
                 + [cfg["c_last"], e_dim, c0])
    col_tile, padded_ncols = _choose_tiling(
        B, L, max_channels=max_ch, kernel_size=cfg["kernel_size"])

    # (B, C, L) -> channels-major flattened columns (C, B*L), lane-padded
    cols = jnp.transpose(x_ncl, (1, 0, 2)).reshape(c0, ncols).astype(jnp.float32)
    if padded_ncols > ncols:
        cols = jnp.pad(cols, ((0, 0), (0, padded_ncols - ncols)))

    kernel = _build_fused_kernel(cfg, L)
    grid = (padded_ncols // col_tile,)

    in_specs = [pl.BlockSpec((c0, col_tile), lambda i: (0, i))]
    in_specs += [_full_spec(w) for w in weights]
    out_specs = [pl.BlockSpec((num_out, col_tile), lambda i: (0, i)),
                 pl.BlockSpec((e_dim, col_tile), lambda i: (0, i))]

    dec_cols, enc_cols = pl.pallas_call(
        kernel,
        out_shape=(jax.ShapeDtypeStruct((num_out, padded_ncols), jnp.float32),
                   jax.ShapeDtypeStruct((e_dim, padded_ncols), jnp.float32)),
        grid_spec=pltpu.PrefetchScalarGridSpec(
            num_scalar_prefetch=0,
            grid=grid,
            in_specs=in_specs,
            out_specs=out_specs),
        compiler_params=pltpu.CompilerParams(
            dimension_semantics=("parallel",),
            vmem_limit_bytes=_VMEM_LIMIT),
    )(cols, *weights)

    decoded = jnp.transpose(dec_cols[:, :ncols].reshape(num_out, B, L), (1, 0, 2))
    encoded = jnp.transpose(enc_cols[:, :ncols].reshape(e_dim, B, L), (1, 2, 0))
    return decoded, encoded


# --------------------------------------------------------------------------
# pure-JAX reference (correctness check)
# --------------------------------------------------------------------------
def _ref_bn(x, gamma, beta, mean, var):
    return ((x - mean[None, :, None]) / jnp.sqrt(var[None, :, None] + _BN_EPS)
            * gamma[None, :, None] + beta[None, :, None])


def _ref_conv1d(x, w, b, dilation, pad):
    y = lax.conv_general_dilated(x, w, window_strides=(1,), padding=[(pad, pad)],
                                 rhs_dilation=(dilation,),
                                 dimension_numbers=("NCH", "OIH", "NCH"))
    return y + b[None, :, None]


def _ref_encoder_block(x, p, K, dilation):
    pad = (K - 1) * dilation
    out = _ref_conv1d(x, p["w1"], p["b1"], dilation, pad)[:, :, :-pad]
    out = jnp.maximum(out, 0.0)
    out = _ref_bn(out, p["gamma1"], p["beta1"], p["mean1"], p["var1"])
    out = _ref_conv1d(out, p["w2"], p["b2"], dilation, pad)[:, :, :-pad]
    out = jnp.maximum(out, 0.0)
    out = _ref_bn(out, p["gamma2"], p["beta2"], p["mean2"], p["var2"])
    res = x if p["wd"] is None else _ref_conv1d(x, p["wd"], p["bd"], 1, 0)
    return jnp.maximum(out + res, 0.0)


def _ref_deconv1d(x, w, b, dilation):
    K = w.shape[2]
    wf = jnp.transpose(w, (1, 0, 2))[:, :, ::-1]
    pad = dilation * (K - 1)
    y = lax.conv_general_dilated(x, wf, window_strides=(1,), padding=[(pad, pad)],
                                 rhs_dilation=(dilation,),
                                 dimension_numbers=("NCH", "OIH", "NCH"))
    return y + b[None, :, None]


def _ref_decoder_block(x, p, K, dilation):
    drop = (K - 1) * dilation
    out = _ref_deconv1d(x, p["w1"], p["b1"], dilation)[:, :, :-drop]   # chomp1
    out = _ref_bn(out, p["gamma1"], p["beta1"], p["mean1"], p["var1"])
    out = jnp.maximum(out, 0.0)
    out = _ref_deconv1d(out, p["w2"], p["b2"], dilation)
    out = _ref_bn(out, p["gamma2"], p["beta2"], p["mean2"], p["var2"])
    out = out[:, :, :-drop]                                            # chomp2
    out = jnp.maximum(out, 0.0)
    if p["wd"] is None:
        res = x
    else:
        res = jnp.einsum("io,bil->bol", p["wd"][:, :, 0], x) + p["bd"][None, :, None]
    return jnp.maximum(out + res, 0.0)


def tcnn_autoencoder_reference(x, params, *, kernel_size):
    num_levels = len(params["enc"])
    h = x
    for i, p in enumerate(params["enc"]):
        h = _ref_encoder_block(h, p, kernel_size, 2 ** i)
    enc = jnp.transpose(h, (0, 2, 1)) @ params["linear_enc_w"].T + params["linear_enc_b"]
    nrm = jnp.sqrt(jnp.sum(enc * enc, axis=2, keepdims=True))
    enc = enc / jnp.maximum(nrm, _NORM_EPS)
    dec = enc @ params["linear_dec_w"].T + params["linear_dec_b"]
    h = jnp.transpose(dec, (0, 2, 1))
    for i, p in enumerate(params["dec"]):
        h = _ref_decoder_block(h, p, kernel_size, 2 ** (num_levels - (i + 1)))
    return h, enc


# --------------------------------------------------------------------------
# deterministic parameter construction
# --------------------------------------------------------------------------
def make_params(key, num_inputs, num_channels, output_size, kernel_size):
    num_levels = len(num_channels)
    keys = iter(jax.random.split(key, 64 * (num_levels + 1)))
    nk = lambda: next(keys)

    def wn_weight(shape):
        v = 0.5 * jax.random.normal(nk(), shape, jnp.float32)
        g = 1.0 + 0.2 * jax.random.normal(nk(), (shape[0],), jnp.float32)
        norm = jnp.sqrt(jnp.sum(v * v, axis=tuple(range(1, len(shape))),
                                keepdims=True))
        return g.reshape((-1,) + (1,) * (len(shape) - 1)) * v / norm

    def bn_params(c, tag, d):
        d["gamma" + tag] = 1.0 + 0.1 * jax.random.normal(nk(), (c,), jnp.float32)
        d["beta" + tag] = 0.1 * jax.random.normal(nk(), (c,), jnp.float32)
        d["mean" + tag] = 0.1 * jax.random.normal(nk(), (c,), jnp.float32)
        d["var" + tag] = 0.5 + jnp.abs(jax.random.normal(nk(), (c,), jnp.float32))

    def block(cin, cout, transposed):
        w1_shape = (cin, cout, kernel_size) if transposed else (cout, cin, kernel_size)
        p = {"w1": wn_weight(w1_shape),
             "b1": 0.1 * jax.random.normal(nk(), (cout,), jnp.float32),
             "w2": wn_weight((cout, cout, kernel_size)),
             "b2": 0.1 * jax.random.normal(nk(), (cout,), jnp.float32)}
        bn_params(cout, "1", p)
        bn_params(cout, "2", p)
        if cin != cout:
            wd_shape = (cin, cout, 1) if transposed else (cout, cin, 1)
            p["wd"] = 0.1 * jax.random.normal(nk(), wd_shape, jnp.float32)
            p["bd"] = 0.1 * jax.random.normal(nk(), (cout,), jnp.float32)
        else:
            p["wd"] = None
            p["bd"] = None
        return p

    enc = []
    for i in range(num_levels):
        cin = num_inputs if i == 0 else num_channels[i - 1]
        enc.append(block(cin, num_channels[i], transposed=False))
    rev = list(reversed(num_channels))
    dec = []
    for i in range(num_levels):
        cin = rev[i]
        cout = rev[i + 1] if i < num_levels - 1 else num_inputs
        dec.append(block(cin, cout, transposed=True))
    c_last = num_channels[-1]
    return {
        "enc": enc, "dec": dec,
        "linear_enc_w": jax.random.normal(nk(), (output_size, c_last),
                                          jnp.float32) / jnp.sqrt(float(c_last)),
        "linear_enc_b": 0.1 * jax.random.normal(nk(), (output_size,), jnp.float32),
        "linear_dec_w": jax.random.normal(nk(), (c_last, output_size),
                                          jnp.float32) / jnp.sqrt(float(output_size)),
        "linear_dec_b": 0.1 * jax.random.normal(nk(), (c_last,), jnp.float32),
    }


# --------------------------------------------------------------------------
if __name__ == "__main__":
    # TcnnAutoEncoder(num_inputs=8, output_size=8, num_channels=[16, 32],
    #                 kernel_size=3, dropout=0.2), eval mode.
    B, L = 2, 16
    num_inputs, output_size = 8, 8
    num_channels = [16, 32]
    K = 3

    key = jax.random.PRNGKey(0)
    kx, kp = jax.random.split(key)
    x = jax.random.normal(kx, (B, num_inputs, L), jnp.float32)  # NCL, like torch
    params = make_params(kp, num_inputs, num_channels, output_size, K)

    # Weight packing hoisted out of the jitted forward (runs once, eagerly).
    weights, cfg = pack_params(params, kernel_size=K)

    fwd = jax.jit(functools.partial(tcnn_autoencoder_forward_packed, cfg=cfg))
    decoded, encoded = fwd(x, weights)
    decoded = jax.block_until_ready(decoded)
    encoded = jax.block_until_ready(encoded)

    ref_dec, ref_enc = tcnn_autoencoder_reference(x, params, kernel_size=K)
    assert decoded.shape == (B, num_inputs, L), decoded.shape
    assert encoded.shape == (B, L, output_size), encoded.shape
    assert jnp.allclose(encoded, ref_enc, atol=1e-4, rtol=1e-4), \
        float(jnp.max(jnp.abs(encoded - ref_enc)))
    assert jnp.allclose(decoded, ref_dec, atol=1e-4, rtol=1e-4), \
        float(jnp.max(jnp.abs(decoded - ref_dec)))
    print("KERNEL_OK")
</pallas_src>

<mosaic_0001>
module attributes {stable_mosaic.version = 11 : i64} {
  func.func @kernel(%arg0: i32, %arg1: memref<8x128xf32, #tpu.memory_space<vmem>>, %arg2: memref<32x24xf32, #tpu.memory_space<vmem>>, %arg3: memref<16x48xf32, #tpu.memory_space<vmem>>, %arg4: memref<16x7xf32, #tpu.memory_space<vmem>>, %arg5: memref<64x48xf32, #tpu.memory_space<vmem>>, %arg6: memref<32x96xf32, #tpu.memory_space<vmem>>, %arg7: memref<32x7xf32, #tpu.memory_space<vmem>>, %arg8: memref<8x32xf32, #tpu.memory_space<vmem>>, %arg9: memref<8x1xf32, #tpu.memory_space<vmem>>, %arg10: memref<32x8xf32, #tpu.memory_space<vmem>>, %arg11: memref<32x1xf32, #tpu.memory_space<vmem>>, %arg12: memref<32x96xf32, #tpu.memory_space<vmem>>, %arg13: memref<16x48xf32, #tpu.memory_space<vmem>>, %arg14: memref<16x7xf32, #tpu.memory_space<vmem>>, %arg15: memref<16x48xf32, #tpu.memory_space<vmem>>, %arg16: memref<8x24xf32, #tpu.memory_space<vmem>>, %arg17: memref<8x7xf32, #tpu.memory_space<vmem>>, %arg18: memref<8x128xf32, #tpu.memory_space<vmem>>, %arg19: memref<8x128xf32, #tpu.memory_space<vmem>>) attributes {dimension_semantics = [#tpu.dimension_semantics<parallel>], iteration_bounds = array<i64: 1>, scalar_prefetch = 0 : i64, scratch_operands = 0 : i64, tpu.core_type = #tpu.core_type<tc>, window_params = [{transform_indices = @transform_0, window_bounds = array<i64: 8, 128>}, {pipeline_mode = #tpu.pipeline_mode<synchronous>, transform_indices = @transform_1, window_bounds = array<i64: 32, 24>}, {pipeline_mode = #tpu.pipeline_mode<synchronous>, transform_indices = @transform_2, window_bounds = array<i64: 16, 48>}, {pipeline_mode = #tpu.pipeline_mode<synchronous>, transform_indices = @transform_3, window_bounds = array<i64: 16, 7>}, {pipeline_mode = #tpu.pipeline_mode<synchronous>, transform_indices = @transform_4, window_bounds = array<i64: 64, 48>}, {pipeline_mode = #tpu.pipeline_mode<synchronous>, transform_indices = @transform_5, window_bounds = array<i64: 32, 96>}, {pipeline_mode = #tpu.pipeline_mode<synchronous>, transform_indices = @transform_6, window_bounds = array<i64: 32, 7>}, {pipeline_mode = #tpu.pipeline_mode<synchronous>, transform_indices = @transform_7, window_bounds = array<i64: 8, 32>}, {pipeline_mode = #tpu.pipeline_mode<synchronous>, transform_indices = @transform_8, window_bounds = array<i64: 8, 1>}, {pipeline_mode = #tpu.pipeline_mode<synchronous>, transform_indices = @transform_9, window_bounds = array<i64: 32, 8>}, {pipeline_mode = #tpu.pipeline_mode<synchronous>, transform_indices = @transform_10, window_bounds = array<i64: 32, 1>}, {pipeline_mode = #tpu.pipeline_mode<synchronous>, transform_indices = @transform_11, window_bounds = array<i64: 32, 96>}, {pipeline_mode = #tpu.pipeline_mode<synchronous>, transform_indices = @transform_12, window_bounds = array<i64: 16, 48>}, {pipeline_mode = #tpu.pipeline_mode<synchronous>, transform_indices = @transform_13, window_bounds = array<i64: 16, 7>}, {pipeline_mode = #tpu.pipeline_mode<synchronous>, transform_indices = @transform_14, window_bounds = array<i64: 16, 48>}, {pipeline_mode = #tpu.pipeline_mode<synchronous>, transform_indices = @transform_15, window_bounds = array<i64: 8, 24>}, {pipeline_mode = #tpu.pipeline_mode<synchronous>, transform_indices = @transform_16, window_bounds = array<i64: 8, 7>}, {transform_indices = @transform_17, window_bounds = array<i64: 8, 128>}, {transform_indices = @transform_18, window_bounds = array<i64: 8, 128>}]} {
    %0 = tpu.iota {dimensions = array<i32: 1>} : vector<1x128xi32>
    %c15_i32 = arith.constant 15 : i32
    %1 = vector.broadcast %c15_i32 : i32 to vector<1x128xi32>
    %2 = arith.andi %0, %1 : vector<1x128xi32>
    %c1_i32 = arith.constant 1 : i32
    %3 = vector.broadcast %c1_i32 : i32 to vector<1x128xi32>
    %4 = arith.cmpi sge, %2, %3 : vector<1x128xi32>
    %c2_i32 = arith.constant 2 : i32
    %5 = vector.broadcast %c2_i32 : i32 to vector<1x128xi32>
    %6 = arith.cmpi sge, %2, %5 : vector<1x128xi32>
    %c4_i32 = arith.constant 4 : i32
    %7 = vector.broadcast %c4_i32 : i32 to vector<1x128xi32>
    %8 = arith.cmpi sge, %2, %7 : vector<1x128xi32>
    %c0 = arith.constant 0 : index
    %c0_0 = arith.constant 0 : index
    %9 = vector.load %arg1[%c0, %c0_0] : memref<8x128xf32, #tpu.memory_space<vmem>>, vector<8x128xf32>
    %c0_1 = arith.constant 0 : index
    %c0_2 = arith.constant 0 : index
    %10 = vector.load %arg4[%c0_1, %c0_2] : memref<16x7xf32, #tpu.memory_space<vmem>>, vector<16x7xf32>
    %11 = vector.extract_strided_slice %10 {offsets = [0, 0], sizes = [16, 1], strides = [1, 1]} : vector<16x7xf32> to vector<16x1xf32>
    %12 = vector.extract_strided_slice %10 {offsets = [0, 1], sizes = [16, 1], strides = [1, 1]} : vector<16x7xf32> to vector<16x1xf32>
    %13 = vector.extract_strided_slice %10 {offsets = [0, 2], sizes = [16, 1], strides = [1, 1]} : vector<16x7xf32> to vector<16x1xf32>
    %14 = vector.extract_strided_slice %10 {offsets = [0, 3], sizes = [16, 1], strides = [1, 1]} : vector<16x7xf32> to vector<16x1xf32>
    %15 = vector.extract_strided_slice %10 {offsets = [0, 4], sizes = [16, 1], strides = [1, 1]} : vector<16x7xf32> to vector<16x1xf32>
    %16 = vector.extract_strided_slice %10 {offsets = [0, 5], sizes = [16, 1], strides = [1, 1]} : vector<16x7xf32> to vector<16x1xf32>
    %17 = vector.extract_strided_slice %10 {offsets = [0, 6], sizes = [16, 1], strides = [1, 1]} : vector<16x7xf32> to vector<16x1xf32>
    %c0_3 = arith.constant 0 : index
    %c0_4 = arith.constant 0 : index
    %18 = vector.load %arg2[%c0_3, %c0_4] : memref<32x24xf32, #tpu.memory_space<vmem>>, vector<32x24xf32>
    %c1_i32_5 = arith.constant 1 : i32
    %19 = tpu.dynamic_rotate %9 by %c1_i32_5 dim 1 : vector<8x128xf32>, i32 -> vector<8x128xf32>
    %cst = arith.constant 0.000000e+00 : f32
    %20 = vector.shape_cast %4 : vector<1x128xi1> to vector<1x128xi1>
    %21 = vector.broadcast %20 : vector<1x128xi1> to vector<8x128xi1>
    %22 = vector.broadcast %cst : f32 to vector<8x128xf32>
    %23 = arith.select %21, %19, %22 : vector<8x128xi1>, vector<8x128xf32>
    %c2_i32_6 = arith.constant 2 : i32
    %24 = tpu.dynamic_rotate %9 by %c2_i32_6 dim 1 : vector<8x128xf32>, i32 -> vector<8x128xf32>
    %cst_7 = arith.constant 0.000000e+00 : f32
    %25 = vector.shape_cast %6 : vector<1x128xi1> to vector<1x128xi1>
    %26 = vector.broadcast %25 : vector<1x128xi1> to vector<8x128xi1>
    %27 = vector.broadcast %cst_7 : f32 to vector<8x128xf32>
    %28 = arith.select %26, %24, %27 : vector<8x128xi1>, vector<8x128xf32>
    %29 = tpu.concatenate %9, %23, %28 in 0 : vector<8x128xf32>, vector<8x128xf32>, vector<8x128xf32> -> vector<24x128xf32>
    %cst_8 = arith.constant dense<0.000000e+00> : vector<32x128xf32>
    %30 = tpu.matmul %18, %29, %cst_8 {dimension_numbers = #tpu.dot_dimension_numbers<[1], [0], [0], [1], [0, 0, 1, 1], [], []>} : vector<32x24xf32>, vector<24x128xf32>, vector<32x128xf32> -> vector<32x128xf32>
    %31 = vector.extract_strided_slice %30 {offsets = [0, 0], sizes = [16, 128], strides = [1, 1]} : vector<32x128xf32> to vector<16x128xf32>
    %32 = vector.broadcast %11 : vector<16x1xf32> to vector<16x128xf32>
    %33 = arith.addf %31, %32 : vector<16x128xf32>
    %34 = vector.extract_strided_slice %30 {offsets = [16, 0], sizes = [16, 128], strides = [1, 1]} : vector<32x128xf32> to vector<16x128xf32>
    %35 = vector.broadcast %17 : vector<16x1xf32> to vector<16x128xf32>
    %36 = arith.addf %34, %35 : vector<16x128xf32>
    %cst_9 = arith.constant 0.000000e+00 : f32
    %37 = vector.broadcast %cst_9 : f32 to vector<16x128xf32>
    %38 = arith.maximumf %33, %37 : vector<16x128xf32>
    %39 = vector.broadcast %12 : vector<16x1xf32> to vector<16x128xf32>
    %40 = arith.mulf %38, %39 : vector<16x128xf32>
    %41 = vector.broadcast %13 : vector<16x1xf32> to vector<16x128xf32>
    %42 = arith.addf %40, %41 : vector<16x128xf32>
    %c0_10 = arith.constant 0 : index
    %c0_11 = arith.constant 0 : index
    %43 = vector.load %arg3[%c0_10, %c0_11] : memref<16x48xf32, #tpu.memory_space<vmem>>, vector<16x48xf32>
    %c1_i32_12 = arith.constant 1 : i32
    %44 = tpu.dynamic_rotate %42 by %c1_i32_12 dim 1 : vector<16x128xf32>, i32 -> vector<16x128xf32>
    %cst_13 = arith.constant 0.000000e+00 : f32
    %45 = vector.shape_cast %4 : vector<1x128xi1> to vector<1x128xi1>
    %46 = vector.broadcast %45 : vector<1x128xi1> to vector<16x128xi1>
    %47 = vector.broadcast %cst_13 : f32 to vector<16x128xf32>
    %48 = arith.select %46, %44, %47 : vector<16x128xi1>, vector<16x128xf32>
    %c2_i32_14 = arith.constant 2 : i32
    %49 = tpu.dynamic_rotate %42 by %c2_i32_14 dim 1 : vector<16x128xf32>, i32 -> vector<16x128xf32>
    %cst_15 = arith.constant 0.000000e+00 : f32
    %50 = vector.shape_cast %6 : vector<1x128xi1> to vector<1x128xi1>
    %51 = vector.broadcast %50 : vector<1x128xi1> to vector<16x128xi1>
    %52 = vector.broadcast %cst_15 : f32 to vector<16x128xf32>
    %53 = arith.select %51, %49, %52 : vector<16x128xi1>, vector<16x128xf32>
    %54 = tpu.concatenate %42, %48, %53 in 0 : vector<16x128xf32>, vector<16x128xf32>, vector<16x128xf32> -> vector<48x128xf32>
    %cst_16 = arith.constant dense<0.000000e+00> : vector<16x128xf32>
    %55 = tpu.matmul %43, %54, %cst_16 {dimension_numbers = #tpu.dot_dimension_numbers<[1], [0], [0], [1], [0, 0, 1, 1], [], []>} : vector<16x48xf32>, vector<48x128xf32>, vector<16x128xf32> -> vector<16x128xf32>
    %56 = vector.broadcast %14 : vector<16x1xf32> to vector<16x128xf32>
    %57 = arith.addf %55, %56 : vector<16x128xf32>
    %cst_17 = arith.constant 0.000000e+00 : f32
    %58 = vector.broadcast %cst_17 : f32 to vector<16x128xf32>
    %59 = arith.maximumf %57, %58 : vector<16x128xf32>
    %60 = vector.broadcast %15 : vector<16x1xf32> to vector<16x128xf32>
    %61 = arith.mulf %59, %60 : vector<16x128xf32>
    %62 = vector.broadcast %16 : vector<16x1xf32> to vector<16x128xf32>
    %63 = arith.addf %61, %62 : vector<16x128xf32>
    %64 = arith.addf %63, %36 : vector<16x128xf32>
    %cst_18 = arith.constant 0.000000e+00 : f32
    %65 = vector.broadcast %cst_18 : f32 to vector<16x128xf32>
    %66 = arith.maximumf %64, %65 : vector<16x128xf32>
    %c0_19 = arith.constant 0 : index
    %c0_20 = arith.constant 0 : index
    %67 = vector.load %arg7[%c0_19, %c0_20] : memref<32x7xf32, #tpu.memory_space<vmem>>, vector<32x7xf32>
    %68 = vector.extract_strided_slice %67 {offsets = [0, 0], sizes = [32, 1], strides = [1, 1]} : vector<32x7xf32> to vector<32x1xf32>
    %69 = vector.extract_strided_slice %67 {offsets = [0, 1], sizes = [32, 1], strides = [1, 1]} : vector<32x7xf32> to vector<32x1xf32>
    %70 = vector.extract_strided_slice %67 {offsets = [0, 2], sizes = [32, 1], strides = [1, 1]} : vector<32x7xf32> to vector<32x1xf32>
    %71 = vector.extract_strided_slice %67 {offsets = [0, 3], sizes = [32, 1], strides = [1, 1]} : vector<32x7xf32> to vector<32x1xf32>
    %72 = vector.extract_strided_slice %67 {offsets = [0, 4], sizes = [32, 1], strides = [1, 1]} : vector<32x7xf32> to vector<32x1xf32>
    %73 = vector.extract_strided_slice %67 {offsets = [0, 5], sizes = [32, 1], strides = [1, 1]} : vector<32x7xf32> to vector<32x1xf32>
    %74 = vector.extract_strided_slice %67 {offsets = [0, 6], sizes = [32, 1], strides = [1, 1]} : vector<32x7xf32> to vector<32x1xf32>
    %c0_21 = arith.constant 0 : index
    %c0_22 = arith.constant 0 : index
    %75 = vector.load %arg5[%c0_21, %c0_22] : memref<64x48xf32, #tpu.memory_space<vmem>>, vector<64x48xf32>
    %c2_i32_23 = arith.constant 2 : i32
    %76 = tpu.dynamic_rotate %66 by %c2_i32_23 dim 1 : vector<16x128xf32>, i32 -> vector<16x128xf32>
    %cst_24 = arith.constant 0.000000e+00 : f32
    %77 = vector.shape_cast %6 : vector<1x128xi1> to vector<1x128xi1>
    %78 = vector.broadcast %77 : vector<1x128xi1> to vector<16x128xi1>
    %79 = vector.broadcast %cst_24 : f32 to vector<16x128xf32>
    %80 = arith.select %78, %76, %79 : vector<16x128xi1>, vector<16x128xf32>
    %c4_i32_25 = arith.constant 4 : i32
    %81 = tpu.dynamic_rotate %66 by %c4_i32_25 dim 1 : vector<16x128xf32>, i32 -> vector<16x128xf32>
    %cst_26 = arith.constant 0.000000e+00 : f32
    %82 = vector.shape_cast %8 : vector<1x128xi1> to vector<1x128xi1>
    %83 = vector.broadcast %82 : vector<1x128xi1> to vector<16x128xi1>
    %84 = vector.broadcast %cst_26 : f32 to vector<16x128xf32>
    %85 = arith.select %83, %81, %84 : vector<16x128xi1>, vector<16x128xf32>
    %86 = tpu.concatenate %66, %80, %85 in 0 : vector<16x128xf32>, vector<16x128xf32>, vector<16x128xf32> -> vector<48x128xf32>
    %cst_27 = arith.constant dense<0.000000e+00> : vector<64x128xf32>
    %87 = tpu.matmul %75, %86, %cst_27 {dimension_numbers = #tpu.dot_dimension_numbers<[1], [0], [0], [1], [0, 0, 1, 1], [], []>} : vector<64x48xf32>, vector<48x128xf32>, vector<64x128xf32> -> vector<64x128xf32>
    %88 = vector.extract_strided_slice %87 {offsets = [0, 0], sizes = [32, 128], strides = [1, 1]} : vector<64x128xf32> to vector<32x128xf32>
    %89 = vector.broadcast %68 : vector<32x1xf32> to vector<32x128xf32>
    %90 = arith.addf %88, %89 : vector<32x128xf32>
    %91 = vector.extract_strided_slice %87 {offsets = [32, 0], sizes = [32, 128], strides = [1, 1]} : vector<64x128xf32> to vector<32x128xf32>
    %92 = vector.broadcast %74 : vector<32x1xf32> to vector<32x128xf32>
    %93 = arith.addf %91, %92 : vector<32x128xf32>
    %cst_28 = arith.constant 0.000000e+00 : f32
    %94 = vector.broadcast %cst_28 : f32 to vector<32x128xf32>
    %95 = arith.maximumf %90, %94 : vector<32x128xf32>
    %96 = vector.broadcast %69 : vector<32x1xf32> to vector<32x128xf32>
    %97 = arith.mulf %95, %96 : vector<32x128xf32>
    %98 = vector.broadcast %70 : vector<32x1xf32> to vector<32x128xf32>
    %99 = arith.addf %97, %98 : vector<32x128xf32>
    %c0_29 = arith.constant 0 : index
    %c0_30 = arith.constant 0 : index
    %100 = vector.load %arg6[%c0_29, %c0_30] : memref<32x96xf32, #tpu.memory_space<vmem>>, vector<32x96xf32>
    %c2_i32_31 = arith.constant 2 : i32
    %101 = tpu.dynamic_rotate %99 by %c2_i32_31 dim 1 : vector<32x128xf32>, i32 -> vector<32x128xf32>
    %cst_32 = arith.constant 0.000000e+00 : f32
    %102 = vector.shape_cast %6 : vector<1x128xi1> to vector<1x128xi1>
    %103 = vector.broadcast %102 : vector<1x128xi1> to vector<32x128xi1>
    %104 = vector.broadcast %cst_32 : f32 to vector<32x128xf32>
    %105 = arith.select %103, %101, %104 : vector<32x128xi1>, vector<32x128xf32>
    %c4_i32_33 = arith.constant 4 : i32
    %106 = tpu.dynamic_rotate %99 by %c4_i32_33 dim 1 : vector<32x128xf32>, i32 -> vector<32x128xf32>
    %cst_34 = arith.constant 0.000000e+00 : f32
    %107 = vector.shape_cast %8 : vector<1x128xi1> to vector<1x128xi1>
    %108 = vector.broadcast %107 : vector<1x128xi1> to vector<32x128xi1>
    %109 = vector.broadcast %cst_34 : f32 to vector<32x128xf32>
    %110 = arith.select %108, %106, %109 : vector<32x128xi1>, vector<32x128xf32>
    %111 = tpu.concatenate %99, %105, %110 in 0 : vector<32x128xf32>, vector<32x128xf32>, vector<32x128xf32> -> vector<96x128xf32>
    %cst_35 = arith.constant dense<0.000000e+00> : vector<32x128xf32>
    %112 = tpu.matmul %100, %111, %cst_35 {dimension_numbers = #tpu.dot_dimension_numbers<[1], [0], [0], [1], [0, 0, 1, 1], [], []>} : vector<32x96xf32>, vector<96x128xf32>, vector<32x128xf32> -> vector<32x128xf32>
    %113 = vector.broadcast %71 : vector<32x1xf32> to vector<32x128xf32>
    %114 = arith.addf %112, %113 : vector<32x128xf32>
    %cst_36 = arith.constant 0.000000e+00 : f32
    %115 = vector.broadcast %cst_36 : f32 to vector<32x128xf32>
    %116 = arith.maximumf %114, %115 : vector<32x128xf32>
    %117 = vector.broadcast %72 : vector<32x1xf32> to vector<32x128xf32>
    %118 = arith.mulf %116, %117 : vector<32x128xf32>
    %119 = vector.broadcast %73 : vector<32x1xf32> to vector<32x128xf32>
    %120 = arith.addf %118, %119 : vector<32x128xf32>
    %121 = arith.addf %120, %93 : vector<32x128xf32>
    %cst_37 = arith.constant 0.000000e+00 : f32
    %122 = vector.broadcast %cst_37 : f32 to vector<32x128xf32>
    %123 = arith.maximumf %121, %122 : vector<32x128xf32>
    %c0_38 = arith.constant 0 : index
    %c0_39 = arith.constant 0 : index
    %124 = vector.load %arg8[%c0_38, %c0_39] : memref<8x32xf32, #tpu.memory_space<vmem>>, vector<8x32xf32>
    %cst_40 = arith.constant dense<0.000000e+00> : vector<8x128xf32>
    %125 = tpu.matmul %124, %123, %cst_40 {dimension_numbers = #tpu.dot_dimension_numbers<[1], [0], [0], [1], [0, 0, 1, 1], [], []>} : vector<8x32xf32>, vector<32x128xf32>, vector<8x128xf32> -> vector<8x128xf32>
    %c0_41 = arith.constant 0 : index
    %c0_42 = arith.constant 0 : index
    %126 = vector.load %arg9[%c0_41, %c0_42] : memref<8x1xf32, #tpu.memory_space<vmem>>, vector<8x1xf32>
    %127 = vector.broadcast %126 : vector<8x1xf32> to vector<8x128xf32>
    %128 = arith.addf %125, %127 : vector<8x128xf32>
    %129 = arith.mulf %128, %128 : vector<8x128xf32>
    %cst_43 = arith.constant dense<0.000000e+00> : vector<128xf32>
    %130 = vector.multi_reduction <add>, %129, %cst_43 [0] : vector<8x128xf32> to vector<128xf32>
    %131 = vector.shape_cast %130 : vector<128xf32> to vector<1x128xf32>
    %132 = math.sqrt %131 : vector<1x128xf32>
    %cst_44 = arith.constant 9.99999996E-13 : f32
    %133 = vector.broadcast %cst_44 : f32 to vector<1x128xf32>
    %134 = arith.maximumf %132, %133 : vector<1x128xf32>
    %135 = vector.broadcast %134 : vector<1x128xf32> to vector<8x128xf32>
    %136 = arith.divf %128, %135 : vector<8x128xf32>
    %c0_45 = arith.constant 0 : index
    %c0_46 = arith.constant 0 : index
    %137 = vector.load %arg19[%c0_45, %c0_46] : memref<8x128xf32, #tpu.memory_space<vmem>>, vector<8x128xf32>
    tpu.vector_store %arg19[%c0_45, %c0_46], %136 {strides = array<i32>} : memref<8x128xf32, #tpu.memory_space<vmem>>, vector<8x128xf32>,
    %c0_47 = arith.constant 0 : index
    %c0_48 = arith.constant 0 : index
    %138 = vector.load %arg10[%c0_47, %c0_48] : memref<32x8xf32, #tpu.memory_space<vmem>>, vector<32x8xf32>
    %cst_49 = arith.constant dense<0.000000e+00> : vector<32x128xf32>
    %139 = tpu.matmul %138, %136, %cst_49 {dimension_numbers = #tpu.dot_dimension_numbers<[1], [0], [0], [1], [0, 0, 1, 1], [], []>} : vector<32x8xf32>, vector<8x128xf32>, vector<32x128xf32> -> vector<32x128xf32>
    %c0_50 = arith.constant 0 : index
    %c0_51 = arith.constant 0 : index
    %140 = vector.load %arg11[%c0_50, %c0_51] : memref<32x1xf32, #tpu.memory_space<vmem>>, vector<32x1xf32>
    %141 = vector.broadcast %140 : vector<32x1xf32> to vector<32x128xf32>
    %142 = arith.addf %139, %141 : vector<32x128xf32>
    %c0_52 = arith.constant 0 : index
    %c0_53 = arith.constant 0 : index
    %143 = vector.load %arg14[%c0_52, %c0_53] : memref<16x7xf32, #tpu.memory_space<vmem>>, vector<16x7xf32>
    %144 = vector.extract_strided_slice %143 {offsets = [0, 0], sizes = [16, 1], strides = [1, 1]} : vector<16x7xf32> to vector<16x1xf32>
    %145 = vector.extract_strided_slice %143 {offsets = [0, 1], sizes = [16, 1], strides = [1, 1]} : vector<16x7xf32> to vector<16x1xf32>
    %146 = vector.extract_strided_slice %143 {offsets = [0, 2], sizes = [16, 1], strides = [1, 1]} : vector<16x7xf32> to vector<16x1xf32>
    %147 = vector.extract_strided_slice %143 {offsets = [0, 3], sizes = [16, 1], strides = [1, 1]} : vector<16x7xf32> to vector<16x1xf32>
    %148 = vector.extract_strided_slice %143 {offsets = [0, 4], sizes = [16, 1], strides = [1, 1]} : vector<16x7xf32> to vector<16x1xf32>
    %149 = vector.extract_strided_slice %143 {offsets = [0, 5], sizes = [16, 1], strides = [1, 1]} : vector<16x7xf32> to vector<16x1xf32>
    %150 = vector.extract_strided_slice %143 {offsets = [0, 6], sizes = [16, 1], strides = [1, 1]} : vector<16x7xf32> to vector<16x1xf32>
    %c0_54 = arith.constant 0 : index
    %c0_55 = arith.constant 0 : index
    %151 = vector.load %arg12[%c0_54, %c0_55] : memref<32x96xf32, #tpu.memory_space<vmem>>, vector<32x96xf32>
    %c2_i32_56 = arith.constant 2 : i32
    %152 = tpu.dynamic_rotate %142 by %c2_i32_56 dim 1 : vector<32x128xf32>, i32 -> vector<32x128xf32>
    %cst_57 = arith.constant 0.000000e+00 : f32
    %153 = vector.shape_cast %6 : vector<1x128xi1> to vector<1x128xi1>
    %154 = vector.broadcast %153 : vector<1x128xi1> to vector<32x128xi1>
    %155 = vector.broadcast %cst_57 : f32 to vector<32x128xf32>
    %156 = arith.select %154, %152, %155 : vector<32x128xi1>, vector<32x128xf32>
    %c4_i32_58 = arith.constant 4 : i32
    %157 = tpu.dynamic_rotate %142 by %c4_i32_58 dim 1 : vector<32x128xf32>, i32 -> vector<32x128xf32>
    %cst_59 = arith.constant 0.000000e+00 : f32
    %158 = vector.shape_cast %8 : vector<1x128xi1> to vector<1x128xi1>
    %159 = vector.broadcast %158 : vector<1x128xi1> to vector<32x128xi1>
    %160 = vector.broadcast %cst_59 : f32 to vector<32x128xf32>
    %161 = arith.select %159, %157, %160 : vector<32x128xi1>, vector<32x128xf32>
    %162 = tpu.concatenate %142, %156, %161 in 0 : vector<32x128xf32>, vector<32x128xf32>, vector<32x128xf32> -> vector<96x128xf32>
    %cst_60 = arith.constant dense<0.000000e+00> : vector<32x128xf32>
    %163 = tpu.matmul %151, %162, %cst_60 {dimension_numbers = #tpu.dot_dimension_numbers<[1], [0], [0], [1], [0, 0, 1, 1], [], []>} : vector<32x96xf32>, vector<96x128xf32>, vector<32x128xf32> -> vector<32x128xf32>
    %164 = vector.extract_strided_slice %163 {offsets = [0, 0], sizes = [16, 128], strides = [1, 1]} : vector<32x128xf32> to vector<16x128xf32>
    %165 = vector.broadcast %144 : vector<16x1xf32> to vector<16x128xf32>
    %166 = arith.addf %164, %165 : vector<16x128xf32>
    %167 = vector.extract_strided_slice %163 {offsets = [16, 0], sizes = [16, 128], strides = [1, 1]} : vector<32x128xf32> to vector<16x128xf32>
    %168 = vector.broadcast %150 : vector<16x1xf32> to vector<16x128xf32>
    %169 = arith.addf %167, %168 : vector<16x128xf32>
    %170 = vector.broadcast %145 : vector<16x1xf32> to vector<16x128xf32>
    %171 = arith.mulf %166, %170 : vector<16x128xf32>
    %172 = vector.broadcast %146 : vector<16x1xf32> to vector<16x128xf32>
    %173 = arith.addf %171, %172 : vector<16x128xf32>
    %cst_61 = arith.constant 0.000000e+00 : f32
    %174 = vector.broadcast %cst_61 : f32 to vector<16x128xf32>
    %175 = arith.maximumf %173, %174 : vector<16x128xf32>
    %c0_62 = arith.constant 0 : index
    %c0_63 = arith.constant 0 : index
    %176 = vector.load %arg13[%c0_62, %c0_63] : memref<16x48xf32, #tpu.memory_space<vmem>>, vector<16x48xf32>
    %c2_i32_64 = arith.constant 2 : i32
    %177 = tpu.dynamic_rotate %175 by %c2_i32_64 dim 1 : vector<16x128xf32>, i32 -> vector<16x128xf32>
    %cst_65 = arith.constant 0.000000e+00 : f32
    %178 = vector.shape_cast %6 : vector<1x128xi1> to vector<1x128xi1>
    %179 = vector.broadcast %178 : vector<1x128xi1> to vector<16x128xi1>
    %180 = vector.broadcast %cst_65 : f32 to vector<16x128xf32>
    %181 = arith.select %179, %177, %180 : vector<16x128xi1>, vector<16x128xf32>
    %c4_i32_66 = arith.constant 4 : i32
    %182 = tpu.dynamic_rotate %175 by %c4_i32_66 dim 1 : vector<16x128xf32>, i32 -> vector<16x128xf32>
    %cst_67 = arith.constant 0.000000e+00 : f32
    %183 = vector.shape_cast %8 : vector<1x128xi1> to vector<1x128xi1>
    %184 = vector.broadcast %183 : vector<1x128xi1> to vector<16x128xi1>
    %185 = vector.broadcast %cst_67 : f32 to vector<16x128xf32>
    %186 = arith.select %184, %182, %185 : vector<16x128xi1>, vector<16x128xf32>
    %187 = tpu.concatenate %175, %181, %186 in 0 : vector<16x128xf32>, vector<16x128xf32>, vector<16x128xf32> -> vector<48x128xf32>
    %cst_68 = arith.constant dense<0.000000e+00> : vector<16x128xf32>
    %188 = tpu.matmul %176, %187, %cst_68 {dimension_numbers = #tpu.dot_dimension_numbers<[1], [0], [0], [1], [0, 0, 1, 1], [], []>} : vector<16x48xf32>, vector<48x128xf32>, vector<16x128xf32> -> vector<16x128xf32>
    %189 = vector.broadcast %147 : vector<16x1xf32> to vector<16x128xf32>
    %190 = arith.addf %188, %189 : vector<16x128xf32>
    %191 = vector.broadcast %148 : vector<16x1xf32> to vector<16x128xf32>
    %192 = arith.mulf %190, %191 : vector<16x128xf32>
    %193 = vector.broadcast %149 : vector<16x1xf32> to vector<16x128xf32>
    %194 = arith.addf %192, %193 : vector<16x128xf32>
    %cst_69 = arith.constant 0.000000e+00 : f32
    %195 = vector.broadcast %cst_69 : f32 to vector<16x128xf32>
    %196 = arith.maximumf %194, %195 : vector<16x128xf32>
    %197 = arith.addf %196, %169 : vector<16x128xf32>
    %cst_70 = arith.constant 0.000000e+00 : f32
    %198 = vector.broadcast %cst_70 : f32 to vector<16x128xf32>
    %199 = arith.maximumf %197, %198 : vector<16x128xf32>
    %c0_71 = arith.constant 0 : index
    %c0_72 = arith.constant 0 : index
    %200 = vector.load %arg17[%c0_71, %c0_72] : memref<8x7xf32, #tpu.memory_space<vmem>>, vector<8x7xf32>
    %201 = vector.extract_strided_slice %200 {offsets = [0, 0], sizes = [8, 1], strides = [1, 1]} : vector<8x7xf32> to vector<8x1xf32>
    %202 = vector.extract_strided_slice %200 {offsets = [0, 1], sizes = [8, 1], strides = [1, 1]} : vector<8x7xf32> to vector<8x1xf32>
    %203 = vector.extract_strided_slice %200 {offsets = [0, 2], sizes = [8, 1], strides = [1, 1]} : vector<8x7xf32> to vector<8x1xf32>
    %204 = vector.extract_strided_slice %200 {offsets = [0, 3], sizes = [8, 1], strides = [1, 1]} : vector<8x7xf32> to vector<8x1xf32>
    %205 = vector.extract_strided_slice %200 {offsets = [0, 4], sizes = [8, 1], strides = [1, 1]} : vector<8x7xf32> to vector<8x1xf32>
    %206 = vector.extract_strided_slice %200 {offsets = [0, 5], sizes = [8, 1], strides = [1, 1]} : vector<8x7xf32> to vector<8x1xf32>
    %207 = vector.extract_strided_slice %200 {offsets = [0, 6], sizes = [8, 1], strides = [1, 1]} : vector<8x7xf32> to vector<8x1xf32>
    %c0_73 = arith.constant 0 : index
    %c0_74 = arith.constant 0 : index
    %208 = vector.load %arg15[%c0_73, %c0_74] : memref<16x48xf32, #tpu.memory_space<vmem>>, vector<16x48xf32>
    %c1_i32_75 = arith.constant 1 : i32
    %209 = tpu.dynamic_rotate %199 by %c1_i32_75 dim 1 : vector<16x128xf32>, i32 -> vector<16x128xf32>
    %cst_76 = arith.constant 0.000000e+00 : f32
    %210 = vector.shape_cast %4 : vector<1x128xi1> to vector<1x128xi1>
    %211 = vector.broadcast %210 : vector<1x128xi1> to vector<16x128xi1>
    %212 = vector.broadcast %cst_76 : f32 to vector<16x128xf32>
    %213 = arith.select %211, %209, %212 : vector<16x128xi1>, vector<16x128xf32>
    %c2_i32_77 = arith.constant 2 : i32
    %214 = tpu.dynamic_rotate %199 by %c2_i32_77 dim 1 : vector<16x128xf32>, i32 -> vector<16x128xf32>
    %cst_78 = arith.constant 0.000000e+00 : f32
    %215 = vector.shape_cast %6 : vector<1x128xi1> to vector<1x128xi1>
    %216 = vector.broadcast %215 : vector<1x128xi1> to vector<16x128xi1>
    %217 = vector.broadcast %cst_78 : f32 to vector<16x128xf32>
    %218 = arith.select %216, %214, %217 : vector<16x128xi1>, vector<16x128xf32>
    %219 = tpu.concatenate %199, %213, %218 in 0 : vector<16x128xf32>, vector<16x128xf32>, vector<16x128xf32> -> vector<48x128xf32>
    %cst_79 = arith.constant dense<0.000000e+00> : vector<16x128xf32>
    %220 = tpu.matmul %208, %219, %cst_79 {dimension_numbers = #tpu.dot_dimension_numbers<[1], [0], [0], [1], [0, 0, 1, 1], [], []>} : vector<16x48xf32>, vector<48x128xf32>, vector<16x128xf32> -> vector<16x128xf32>
    %221 = vector.extract_strided_slice %220 {offsets = [0, 0], sizes = [8, 128], strides = [1, 1]} : vector<16x128xf32> to vector<8x128xf32>
    %222 = vector.broadcast %201 : vector<8x1xf32> to vector<8x128xf32>
    %223 = arith.addf %221, %222 : vector<8x128xf32>
    %224 = vector.extract_strided_slice %220 {offsets = [8, 0], sizes = [8, 128], strides = [1, 1]} : vector<16x128xf32> to vector<8x128xf32>
    %225 = vector.broadcast %207 : vector<8x1xf32> to vector<8x128xf32>
    %226 = arith.addf %224, %225 : vector<8x128xf32>
    %227 = vector.broadcast %202 : vector<8x1xf32> to vector<8x128xf32>
    %228 = arith.mulf %223, %227 : vector<8x128xf32>
    %229 = vector.broadcast %203 : vector<8x1xf32> to vector<8x128xf32>
    %230 = arith.addf %228, %229 : vector<8x128xf32>
    %cst_80 = arith.constant 0.000000e+00 : f32
    %231 = vector.broadcast %cst_80 : f32 to vector<8x128xf32>
    %232 = arith.maximumf %230, %231 : vector<8x128xf32>
    %c0_81 = arith.constant 0 : index
    %c0_82 = arith.constant 0 : index
    %233 = vector.load %arg16[%c0_81, %c0_82] : memref<8x24xf32, #tpu.memory_space<vmem>>, vector<8x24xf32>
    %c1_i32_83 = arith.constant 1 : i32
    %234 = tpu.dynamic_rotate %232 by %c1_i32_83 dim 1 : vector<8x128xf32>, i32 -> vector<8x128xf32>
    %cst_84 = arith.constant 0.000000e+00 : f32
    %235 = vector.shape_cast %4 : vector<1x128xi1> to vector<1x128xi1>
    %236 = vector.broadcast %235 : vector<1x128xi1> to vector<8x128xi1>
    %237 = vector.broadcast %cst_84 : f32 to vector<8x128xf32>
    %238 = arith.select %236, %234, %237 : vector<8x128xi1>, vector<8x128xf32>
    %c2_i32_85 = arith.constant 2 : i32
    %239 = tpu.dynamic_rotate %232 by %c2_i32_85 dim 1 : vector<8x128xf32>, i32 -> vector<8x128xf32>
    %cst_86 = arith.constant 0.000000e+00 : f32
    %240 = vector.shape_cast %6 : vector<1x128xi1> to vector<1x128xi1>
    %241 = vector.broadcast %240 : vector<1x128xi1> to vector<8x128xi1>
    %242 = vector.broadcast %cst_86 : f32 to vector<8x128xf32>
    %243 = arith.select %241, %239, %242 : vector<8x128xi1>, vector<8x128xf32>
    %244 = tpu.concatenate %232, %238, %243 in 0 : vector<8x128xf32>, vector<8x128xf32>, vector<8x128xf32> -> vector<24x128xf32>
    %cst_87 = arith.constant dense<0.000000e+00> : vector<8x128xf32>
    %245 = tpu.matmul %233, %244, %cst_87 {dimension_numbers = #tpu.dot_dimension_numbers<[1], [0], [0], [1], [0, 0, 1, 1], [], []>} : vector<8x24xf32>, vector<24x128xf32>, vector<8x128xf32> -> vector<8x128xf32>
    %246 = vector.broadcast %204 : vector<8x1xf32> to vector<8x128xf32>
    %247 = arith.addf %245, %246 : vector<8x128xf32>
    %248 = vector.broadcast %205 : vector<8x1xf32> to vector<8x128xf32>
    %249 = arith.mulf %247, %248 : vector<8x128xf32>
    %250 = vector.broadcast %206 : vector<8x1xf32> to vector<8x128xf32>
    %251 = arith.addf %249, %250 : vector<8x128xf32>
    %cst_88 = arith.constant 0.000000e+00 : f32
    %252 = vector.broadcast %cst_88 : f32 to vector<8x128xf32>
    %253 = arith.maximumf %251, %252 : vector<8x128xf32>
    %254 = arith.addf %253, %226 : vector<8x128xf32>
    %cst_89 = arith.constant 0.000000e+00 : f32
    %255 = vector.broadcast %cst_89 : f32 to vector<8x128xf32>
    %256 = arith.maximumf %254, %255 : vector<8x128xf32>
    %c0_90 = arith.constant 0 : index
    %c0_91 = arith.constant 0 : index
    %257 = vector.load %arg18[%c0_90, %c0_91] : memref<8x128xf32, #tpu.memory_space<vmem>>, vector<8x128xf32>
    tpu.vector_store %arg18[%c0_90, %c0_91], %256 {strides = array<i32>} : memref<8x128xf32, #tpu.memory_space<vmem>>, vector<8x128xf32>,
    return
  }
  func.func @transform_0(%arg0: i32) -> (i32, i32) {
    %c0_i32 = arith.constant 0 : i32
    %c0_i32_0 = arith.constant 0 : i32
    return %c0_i32, %arg0 : i32, i32
  }
  func.func @transform_1(%arg0: i32) -> (i32, i32) {
    %c0_i32 = arith.constant 0 : i32
    %c0_i32_0 = arith.constant 0 : i32
    %c0_i32_1 = arith.constant 0 : i32
    return %c0_i32, %c0_i32_0 : i32, i32
  }
  func.func @transform_2(%arg0: i32) -> (i32, i32) {
    %c0_i32 = arith.constant 0 : i32
    %c0_i32_0 = arith.constant 0 : i32
    %c0_i32_1 = arith.constant 0 : i32
    return %c0_i32, %c0_i32_0 : i32, i32
  }
  func.func @transform_3(%arg0: i32) -> (i32, i32) {
    %c0_i32 = arith.constant 0 : i32
    %c0_i32_0 = arith.constant 0 : i32
    %c0_i32_1 = arith.constant 0 : i32
    return %c0_i32, %c0_i32_0 : i32, i32
  }
  func.func @transform_4(%arg0: i32) -> (i32, i32) {
    %c0_i32 = arith.constant 0 : i32
    %c0_i32_0 = arith.constant 0 : i32
    %c0_i32_1 = arith.constant 0 : i32
    return %c0_i32, %c0_i32_0 : i32, i32
  }
  func.func @transform_5(%arg0: i32) -> (i32, i32) {
    %c0_i32 = arith.constant 0 : i32
    %c0_i32_0 = arith.constant 0 : i32
    %c0_i32_1 = arith.constant 0 : i32
    return %c0_i32, %c0_i32_0 : i32, i32
  }
  func.func @transform_6(%arg0: i32) -> (i32, i32) {
    %c0_i32 = arith.constant 0 : i32
    %c0_i32_0 = arith.constant 0 : i32
    %c0_i32_1 = arith.constant 0 : i32
    return %c0_i32, %c0_i32_0 : i32, i32
  }
  func.func @transform_7(%arg0: i32) -> (i32, i32) {
    %c0_i32 = arith.constant 0 : i32
    %c0_i32_0 = arith.constant 0 : i32
    %c0_i32_1 = arith.constant 0 : i32
    return %c0_i32, %c0_i32_0 : i32, i32
  }
  func.func @transform_8(%arg0: i32) -> (i32, i32) {
    %c0_i32 = arith.constant 0 : i32
    %c0_i32_0 = arith.constant 0 : i32
    %c0_i32_1 = arith.constant 0 : i32
    return %c0_i32, %c0_i32_0 : i32, i32
  }
  func.func @transform_9(%arg0: i32) -> (i32, i32) {
    %c0_i32 = arith.constant 0 : i32
    %c0_i32_0 = arith.constant 0 : i32
    %c0_i32_1 = arith.constant 0 : i32
    return %c0_i32, %c0_i32_0 : i32, i32
  }
  func.func @transform_10(%arg0: i32) -> (i32, i32) {
    %c0_i32 = arith.constant 0 : i32
    %c0_i32_0 = arith.constant 0 : i32
    %c0_i32_1 = arith.constant 0 : i32
    return %c0_i32, %c0_i32_0 : i32, i32
  }
  func.func @transform_11(%arg0: i32) -> (i32, i32) {
    %c0_i32 = arith.constant 0 : i32
    %c0_i32_0 = arith.constant 0 : i32
    %c0_i32_1 = arith.constant 0 : i32
    return %c0_i32, %c0_i32_0 : i32, i32
  }
  func.func @transform_12(%arg0: i32) -> (i32, i32) {
    %c0_i32 = arith.constant 0 : i32
    %c0_i32_0 = arith.constant 0 : i32
    %c0_i32_1 = arith.constant 0 : i32
    return %c0_i32, %c0_i32_0 : i32, i32
  }
  func.func @transform_13(%arg0: i32) -> (i32, i32) {
    %c0_i32 = arith.constant 0 : i32
    %c0_i32_0 = arith.constant 0 : i32
    %c0_i32_1 = arith.constant 0 : i32
    return %c0_i32, %c0_i32_0 : i32, i32
  }
  func.func @transform_14(%arg0: i32) -> (i32, i32) {
    %c0_i32 = arith.constant 0 : i32
    %c0_i32_0 = arith.constant 0 : i32
    %c0_i32_1 = arith.constant 0 : i32
    return %c0_i32, %c0_i32_0 : i32, i32
  }
  func.func @transform_15(%arg0: i32) -> (i32, i32) {
    %c0_i32 = arith.constant 0 : i32
    %c0_i32_0 = arith.constant 0 : i32
    %c0_i32_1 = arith.constant 0 : i32
    return %c0_i32, %c0_i32_0 : i32, i32
  }
  func.func @transform_16(%arg0: i32) -> (i32, i32) {
    %c0_i32 = arith.constant 0 : i32
    %c0_i32_0 = arith.constant 0 : i32
    %c0_i32_1 = arith.constant 0 : i32
    return %c0_i32, %c0_i32_0 : i32, i32
  }
  func.func @transform_17(%arg0: i32) -> (i32, i32) {
    %c0_i32 = arith.constant 0 : i32
    %c0_i32_0 = arith.constant 0 : i32
    return %c0_i32, %arg0 : i32, i32
  }
  func.func @transform_18(%arg0: i32) -> (i32, i32) {
    %c0_i32 = arith.constant 0 : i32
    %c0_i32_0 = arith.constant 0 : i32
    return %c0_i32, %arg0 : i32, i32
  }
}

</mosaic_0001>

<llo_original>
// kernel: tcnn_autoencoder_forward_packed.1
$region0: #{tcnn_autoencoder_forward_packed.1}
  #allocation0 [shape = 'u32[]', space=smem, size = 0x4, offset = 0x4, fixed_abs, tag = 'smem constant byte address 0x4 - core index']
  #allocation1 [shape = 'u32[144,128]{1,0:T(1,128)}', space=vmem, size = 0x12000, scoped, tag = 'internal scratch']
  %s0 = inlined_call_operand.vmem [shape: f32[8,128], index: 0, kind: input, shape index: {}]
  %s1 = inlined_call_operand.vmem [shape: f32[32,24], index: 1, kind: input, shape index: {}]
  %s2 = inlined_call_operand.vmem [shape: f32[16,48], index: 2, kind: input, shape index: {}]
  %s3 = inlined_call_operand.vmem [shape: f32[16,7], index: 3, kind: input, shape index: {}]
  %s4 = inlined_call_operand.vmem [shape: f32[64,48], index: 4, kind: input, shape index: {}]
  %s5 = inlined_call_operand.vmem [shape: f32[32,96], index: 5, kind: input, shape index: {}]
  %s6 = inlined_call_operand.vmem [shape: f32[32,7], index: 6, kind: input, shape index: {}]
  %s7 = inlined_call_operand.vmem [shape: f32[8,32], index: 7, kind: input, shape index: {}]
  %s8 = inlined_call_operand.vmem [shape: f32[8,1], index: 8, kind: input, shape index: {}]
  %s9 = inlined_call_operand.vmem [shape: f32[32,8], index: 9, kind: input, shape index: {}]
  %s10 = inlined_call_operand.vmem [shape: f32[32,1], index: 10, kind: input, shape index: {}]
  %s11 = inlined_call_operand.vmem [shape: f32[32,96], index: 11, kind: input, shape index: {}]
  %s12 = inlined_call_operand.vmem [shape: f32[16,48], index: 12, kind: input, shape index: {}]
  %s13 = inlined_call_operand.vmem [shape: f32[16,7], index: 13, kind: input, shape index: {}]
  %s14 = inlined_call_operand.vmem [shape: f32[16,48], index: 14, kind: input, shape index: {}]
  %s15 = inlined_call_operand.vmem [shape: f32[8,24], index: 15, kind: input, shape index: {}]
  %s16 = inlined_call_operand.vmem [shape: f32[8,7], index: 16, kind: input, shape index: {}]
  %s17 = inlined_call_operand.vmem [shape: f32[8,128], index: 17, kind: output, shape index: {0}]
  %s18 = inlined_call_operand.vmem [shape: f32[8,128], index: 18, kind: output, shape index: {1}]
  %19 = xla_tuple %s17, %s18
  %s20 = sld [smem:[#allocation0]]
  $region86: #{tcnn_autoencoder_forward_packed.1} parent=0
    _
  %s22 = ssub.s32 1, %s20
  %s23 = scalar_select 0, %s22, %s20
  // Predicated region
  $region2: #{tcnn_autoencoder_forward_packed.1} parent=0 // pred_check
    _
  $region3: #{tcnn_autoencoder_forward_packed.1} parent=0 // pred_check_branch
    %25 = sbr.rel (0) target = $region5
  $region4: #{tcnn_autoencoder_forward_packed.1} parent=0 // pred_region
    _
  $region5: #{tcnn_autoencoder_forward_packed.1} parent=0 // pred_fallthru
    _
  // Predicated region
  $region6: #{tcnn_autoencoder_forward_packed.1} parent=0 // pred_check
    _
  $region7: #{tcnn_autoencoder_forward_packed.1} parent=0 // pred_check_branch
    %27 = sbr.rel (0) target = $region9
  $region8: #{tcnn_autoencoder_forward_packed.1} parent=0 // pred_region
    _
  $region9: #{tcnn_autoencoder_forward_packed.1} parent=0 // pred_fallthru
    _
  // Predicated region
  $region10: #{tcnn_autoencoder_forward_packed.1} parent=0 // pred_check
    _
  $region11: #{tcnn_autoencoder_forward_packed.1} parent=0 // pred_check_branch
    %29 = sbr.rel (0) target = $region13
  $region12: #{tcnn_autoencoder_forward_packed.1} parent=0 // pred_region
    _
  $region13: #{tcnn_autoencoder_forward_packed.1} parent=0 // pred_fallthru
    _
  // Predicated region
  $region14: #{tcnn_autoencoder_forward_packed.1} parent=0 // pred_check
    _
  $region15: #{tcnn_autoencoder_forward_packed.1} parent=0 // pred_check_branch
    %31 = sbr.rel (0) target = $region17
  $region16: #{tcnn_autoencoder_forward_packed.1} parent=0 // pred_region
    _
  $region17: #{tcnn_autoencoder_forward_packed.1} parent=0 // pred_fallthru
    _
  // Predicated region
  $region18: #{tcnn_autoencoder_forward_packed.1} parent=0 // pred_check
    _
  $region19: #{tcnn_autoencoder_forward_packed.1} parent=0 // pred_check_branch
    %33 = sbr.rel (0) target = $region21
  $region20: #{tcnn_autoencoder_forward_packed.1} parent=0 // pred_region
    _
  $region21: #{tcnn_autoencoder_forward_packed.1} parent=0 // pred_fallthru
    _
  // Predicated region
  $region22: #{tcnn_autoencoder_forward_packed.1} parent=0 // pred_check
    _
  $region23: #{tcnn_autoencoder_forward_packed.1} parent=0 // pred_check_branch
    %35 = sbr.rel (0) target = $region25
  $region24: #{tcnn_autoencoder_forward_packed.1} parent=0 // pred_region
    _
  $region25: #{tcnn_autoencoder_forward_packed.1} parent=0 // pred_fallthru
    _
  // Predicated region
  $region26: #{tcnn_autoencoder_forward_packed.1} parent=0 // pred_check
    _
  $region27: #{tcnn_autoencoder_forward_packed.1} parent=0 // pred_check_branch
    %37 = sbr.rel (0) target = $region29
  $region28: #{tcnn_autoencoder_forward_packed.1} parent=0 // pred_region
    _
  $region29: #{tcnn_autoencoder_forward_packed.1} parent=0 // pred_fallthru
    _
  // Predicated region
  $region30: #{tcnn_autoencoder_forward_packed.1} parent=0 // pred_check
    _
  $region31: #{tcnn_autoencoder_forward_packed.1} parent=0 // pred_check_branch
    %39 = sbr.rel (0) target = $region33
  $region32: #{tcnn_autoencoder_forward_packed.1} parent=0 // pred_region
    _
  $region33: #{tcnn_autoencoder_forward_packed.1} parent=0 // pred_fallthru
    _
  // Predicated region
  $region34: #{tcnn_autoencoder_forward_packed.1} parent=0 // pred_check
    _
  $region35: #{tcnn_autoencoder_forward_packed.1} parent=0 // pred_check_branch
    %41 = sbr.rel (0) target = $region37
  $region36: #{tcnn_autoencoder_forward_packed.1} parent=0 // pred_region
    _
  $region37: #{tcnn_autoencoder_forward_packed.1} parent=0 // pred_fallthru
    _
  // Predicated region
  $region38: #{tcnn_autoencoder_forward_packed.1} parent=0 // pred_check
    _
  $region39: #{tcnn_autoencoder_forward_packed.1} parent=0 // pred_check_branch
    %43 = sbr.rel (0) target = $region41
  $region40: #{tcnn_autoencoder_forward_packed.1} parent=0 // pred_region
    _
  $region41: #{tcnn_autoencoder_forward_packed.1} parent=0 // pred_fallthru
    _
  // Predicated region
  $region42: #{tcnn_autoencoder_forward_packed.1} parent=0 // pred_check
    _
  $region43: #{tcnn_autoencoder_forward_packed.1} parent=0 // pred_check_branch
    %45 = sbr.rel (0) target = $region45
  $region44: #{tcnn_autoencoder_forward_packed.1} parent=0 // pred_region
    _
  $region45: #{tcnn_autoencoder_forward_packed.1} parent=0 // pred_fallthru
    _
  // Predicated region
  $region46: #{tcnn_autoencoder_forward_packed.1} parent=0 // pred_check
    _
  $region47: #{tcnn_autoencoder_forward_packed.1} parent=0 // pred_check_branch
    %47 = sbr.rel (0) target = $region49
  $region48: #{tcnn_autoencoder_forward_packed.1} parent=0 // pred_region
    _
  $region49: #{tcnn_autoencoder_forward_packed.1} parent=0 // pred_fallthru
    _
  // Predicated region
  $region50: #{tcnn_autoencoder_forward_packed.1} parent=0 // pred_check
    _
  $region51: #{tcnn_autoencoder_forward_packed.1} parent=0 // pred_check_branch
    %49 = sbr.rel (0) target = $region53
  $region52: #{tcnn_autoencoder_forward_packed.1} parent=0 // pred_region
    _
  $region53: #{tcnn_autoencoder_forward_packed.1} parent=0 // pred_fallthru
    _
  // Predicated region
  $region54: #{tcnn_autoencoder_forward_packed.1} parent=0 // pred_check
    _
  $region55: #{tcnn_autoencoder_forward_packed.1} parent=0 // pred_check_branch
    %51 = sbr.rel (0) target = $region57
  $region56: #{tcnn_autoencoder_forward_packed.1} parent=0 // pred_region
    _
  $region57: #{tcnn_autoencoder_forward_packed.1} parent=0 // pred_fallthru
    _
  // Predicated region
  $region58: #{tcnn_autoencoder_forward_packed.1} parent=0 // pred_check
    _
  $region59: #{tcnn_autoencoder_forward_packed.1} parent=0 // pred_check_branch
    %53 = sbr.rel (0) target = $region61
  $region60: #{tcnn_autoencoder_forward_packed.1} parent=0 // pred_region
    _
  $region61: #{tcnn_autoencoder_forward_packed.1} parent=0 // pred_fallthru
    _
  // Predicated region
  $region62: #{tcnn_autoencoder_forward_packed.1} parent=0 // pred_check
    _
  $region63: #{tcnn_autoencoder_forward_packed.1} parent=0 // pred_check_branch
    %55 = sbr.rel (0) target = $region65
  $region64: #{tcnn_autoencoder_forward_packed.1} parent=0 // pred_region
    _
  $region65: #{tcnn_autoencoder_forward_packed.1} parent=0 // pred_fallthru
    _
  // Predicated region
  $region66: #{tcnn_autoencoder_forward_packed.1} parent=0 // pred_check
    _
  $region67: #{tcnn_autoencoder_forward_packed.1} parent=0 // pred_check_branch
    %57 = sbr.rel (0) target = $region69
  $region68: #{tcnn_autoencoder_forward_packed.1} parent=0 // pred_region
    _
  $region69: #{tcnn_autoencoder_forward_packed.1} parent=0 // pred_fallthru
    _
  %v58 = vlaneseq
  %v59 = vand.u32 %v58, 127
  %v60 = vand.u32 %v59, 15
  %vm61 = vcmp.ge.s32.totalorder %v60, 1
  %vm62 = vcmp.ge.s32.totalorder %v60, 2
  %vm63 = vcmp.ge.s32.totalorder %v60, 4
  %v64 = vld [vmem:[%s0] sm:$0xff]
  %v65 = vld [vmem:[%s3] sm:$0xff]
  %v66 = vld [vmem:[%s3 + $0x8] sm:$0xff]
  %v67 = vld [vmem:[%s1] sm:$0xff]
  %v68 = vld [vmem:[%s1 + $0x8] sm:$0xff]
  %v69 = vld [vmem:[%s1 + $0x10] sm:$0xff]
  %v70 = vld [vmem:[%s1 + $0x18] sm:$0xff]
  %71 = vrot.lane.b32.xlu0 %v64, 1
  %v72 = vpop.permute.xlu0 %71
  %v73 = vsel %vm61, 1, 0
  %vm74 = vcmp.eq.s32.totalorder %v73, 1
  %v75 = vsel %vm74, %v72, 0.0
  %76 = vrot.lane.b32.xlu0 %v64, 2
  %v77 = vpop.permute.xlu0 %76
  %v78 = vsel %vm62, 1, 0
  %vm79 = vcmp.eq.s32.totalorder %v78, 1
  %v80 = vsel %vm79, %v77, 0.0
  %vm81 = vcmask 195584
  %v83 = vsel %vm81, %v67, 0
  %v86 = vsel %vm81, %v68, 0
  %v89 = vsel %vm81, %v69, 0
  %v92 = vsel %vm81, %v70, 0
  %94 = vmatprep.subr.mxu0 0.0
  %95 = vmatpush1.msra.mxu0 %v64
  %96 = vmatprep.subr.mxu0 0.0
  %97 = vmatpush1.msra.mxu0 %v75
  %98 = vmatprep.subr.mxu0 0.0
  %99 = vmatpush1.msra.mxu0 %v80
  %100 = vmatprep.subr.mxu0 0.0
  %101 = vmatpush1.msra.mxu0 0.0
  %102 = vmatprep.subr.mxu0 0.0
  %103 = vmatpush1.msra.mxu0 0.0
  %104 = vmatprep.subr.mxu0 0.0
  %105 = vmatpush1.msra.mxu0 0.0
  %106 = vmatprep.subr.mxu0 0.0
  %107 = vmatpush1.msra.mxu0 0.0
  %108 = vmatprep.subr.mxu0 0.0
  %109 = vmatpush1.msra.mxu0 0.0
  %110 = vmatprep.subr.mxu0 0.0
  %111 = vmatpush1.msra.mxu0 0.0
  %112 = vmatprep.subr.mxu0 0.0
  %113 = vmatpush1.msra.mxu0 0.0
  %114 = vmatprep.subr.mxu0 0.0
  %115 = vmatpush1.msra.mxu0 0.0
  %116 = vmatprep.subr.mxu0 0.0
  %117 = vmatpush1.msra.mxu0 0.0
  %118 = vmatprep.subr.mxu0 0.0
  %119 = vmatpush1.msra.mxu0 0.0
  %120 = vmatprep.subr.mxu0 0.0
  %121 = vmatpush1.msra.mxu0 0.0
  %122 = vmatprep.subr.mxu0 0.0
  %123 = vmatpush1.msra.mxu0 0.0
  %124 = vmatprep.subr.mxu0 0.0
  %125 = vmatpush1.msra.mxu0 0.0
  %126 = vmatprep.subr.mxu0 0.0
  %127 = vmatpush1.msra.mxu0 0.0
  %128 = vmatprep.subr.mxu0 0.0
  %129 = vmatpush1.msra.mxu0 0.0
  %130 = vmatprep.subr.mxu0 0.0
  %131 = vmatpush1.msra.mxu0 0.0
  %132 = vmatprep.subr.mxu0 0.0
  %133 = vmatpush1.msra.mxu0 0.0
  %134 = vmatprep.subr.mxu0 0.0
  %135 = vmatpush1.msra.mxu0 0.0
  %136 = vmatprep.subr.mxu0 0.0
  %137 = vmatpush1.msra.mxu0 0.0
  %138 = vmatprep.subr.mxu0 0.0
  %139 = vmatpush1.msra.mxu0 0.0
  %140 = vmatprep.subr.mxu0 0.0
  %141 = vmatpush1.msra.mxu0 0.0
  %142 = vmatprep.subr.mxu0 0.0
  %143 = vmatpush1.msra.mxu0 0.0
  %144 = vmatprep.subr.mxu0 0.0
  %145 = vmatpush1.msra.mxu0 0.0
  %146 = vmatprep.subr.mxu0 0.0
  %147 = vmatpush1.msra.mxu0 0.0
  %148 = vmatprep.subr.mxu0 0.0
  %149 = vmatpush1.msra.mxu0 0.0
  %150 = vmatprep.subr.mxu0 0.0
  %151 = vmatpush1.msra.mxu0 0.0
  %152 = vmatprep.subr.mxu0 0.0
  %153 = vmatpush1.msra.mxu0 0.0
  %154 = vmatprep.subr.mxu0 0.0
  %155 = vmatpush1.msra.mxu0 0.0
  %156 = vmatprep.subr.mxu0 0.0
  %157 = vmatpush1.msra.mxu0 0.0
  %158 = vmatprep.mubr.f32.mxu0 0.0
  %159 = vmatmul.mubr.f32.gmra.mrb[0].mxu0 %v83
  %v160 = vpop.f32.mrb[0].mxu0
  %v161 = vadd.f32 0.0, %v160
  %v162 = vpop.f32.mrb[0].mxu0
  %163 = vmatprep.mubr.f32.mxu0 0.0
  %164 = vmatmul.mubr.f32.gmra.mrb[0].mxu0 %v86
  %v165 = vpop.f32.mrb[0].mxu0
  %v166 = vadd.f32 0.0, %v165
  %v167 = vpop.f32.mrb[0].mxu0
  %168 = vmatprep.mubr.f32.mxu0 0.0
  %169 = vmatmul.mubr.f32.gmra.mrb[0].mxu0 %v89
  %v170 = vpop.f32.mrb[0].mxu0
  %v171 = vadd.f32 0.0, %v170
  %v172 = vpop.f32.mrb[0].mxu0
  %173 = vmatprep.mubr.f32.mxu0 0.0
  %174 = vmatmul.mubr.f32.gmra.mrb[0].mxu0 %v92
  %v175 = vpop.f32.mrb[0].mxu0
  %v176 = vadd.f32 0.0, %v175
  %v177 = vpop.f32.mrb[0].mxu0
  %178 = vdwg.mxu0
  %180 = vset.pattern.permute.xlu0 0
  %181 = vperm.xlu0 %180, %v65
  %v182 = vpop.permute.xlu0 %181
  %185 = vset.pattern.permute.xlu0 0
  %186 = vperm.xlu0 %185, %v66
  %v187 = vpop.permute.xlu0 %186
  %v189 = vadd.f32 %v161, %v182
  %v190 = vadd.f32 %v166, %v187
  %191 = vset.pattern.permute.xlu0 6
  %192 = vperm.xlu0 %191, %v65
  %v193 = vpop.permute.xlu0 %192
  %195 = vset.pattern.permute.xlu0 6
  %196 = vperm.xlu0 %195, %v66
  %v197 = vpop.permute.xlu0 %196
  %v199 = vadd.f32 %v171, %v193
  %v200 = vadd.f32 %v176, %v197
  %v201 = vmax.f32 %v189, 0.0
  %v202 = vmax.f32 %v190, 0.0
  %203 = vset.pattern.permute.xlu0 1
  %204 = vperm.xlu0 %203, %v65
  %v205 = vpop.permute.xlu0 %204
  %207 = vset.pattern.permute.xlu0 1
  %208 = vperm.xlu0 %207, %v66
  %v209 = vpop.permute.xlu0 %208
  %v211 = vmul.f32 %v201, %v205
  %v212 = vmul.f32 %v202, %v209
  %213 = vset.pattern.permute.xlu0 2
  %214 = vperm.xlu0 %213, %v65
  %v215 = vpop.permute.xlu0 %214
  %217 = vset.pattern.permute.xlu0 2
  %218 = vperm.xlu0 %217, %v66
  %v219 = vpop.permute.xlu0 %218
  %v221 = vadd.f32 %v211, %v215
  %v222 = vadd.f32 %v212, %v219
  %v223 = vld [vmem:[%s2] sm:$0xff]
  %v224 = vld [vmem:[%s2 + $0x8] sm:$0xff]
  %225 = vrot.lane.b32.xlu0 %v221, 1
  %v226 = vpop.permute.xlu0 %225
  %227 = vrot.lane.b32.xlu0 %v222, 1
  %v228 = vpop.permute.xlu0 %227
  %v229 = vsel %vm74, %v226, 0.0
  %v230 = vsel %vm74, %v228, 0.0
  %231 = vrot.lane.b32.xlu0 %v221, 2
  %v232 = vpop.permute.xlu0 %231
  %233 = vrot.lane.b32.xlu0 %v222, 2
  %v234 = vpop.permute.xlu0 %233
  %v235 = vsel %vm79, %v232, 0.0
  %v236 = vsel %vm79, %v234, 0.0
  %237 = vset.pattern.permute.xlu0 3
  %238 = vperm.xlu0 %237, %v65
  %v239 = vpop.permute.xlu0 %238
  %241 = vset.pattern.permute.xlu0 3
  %242 = vperm.xlu0 %241, %v66
  %v243 = vpop.permute.xlu0 %242
  %vm245 = vcmask 392192
  %v247 = vsel %vm245, %v223, 0
  %v250 = vsel %vm245, %v224, 0
  %252 = vmatprep.subr.mxu0 0.0
  %253 = vmatpush1.msra.mxu0 %v221
  %254 = vmatprep.subr.mxu0 0.0
  %255 = vmatpush1.msra.mxu0 %v222
  %256 = vmatprep.subr.mxu0 0.0
  %257 = vmatpush1.msra.mxu0 %v229
  %258 = vmatprep.subr.mxu0 0.0
  %259 = vmatpush1.msra.mxu0 %v230
  %260 = vmatprep.subr.mxu0 0.0
  %261 = vmatpush1.msra.mxu0 %v235
  %262 = vmatprep.subr.mxu0 0.0
  %263 = vmatpush1.msra.mxu0 %v236
  %264 = vmatprep.subr.mxu0 0.0
  %265 = vmatpush1.msra.mxu0 0.0
  %266 = vmatprep.subr.mxu0 0.0
  %267 = vmatpush1.msra.mxu0 0.0
  %268 = vmatprep.subr.mxu0 0.0
  %269 = vmatpush1.msra.mxu0 0.0
  %270 = vmatprep.subr.mxu0 0.0
  %271 = vmatpush1.msra.mxu0 0.0
  %272 = vmatprep.subr.mxu0 0.0
  %273 = vmatpush1.msra.mxu0 0.0
  %274 = vmatprep.subr.mxu0 0.0
  %275 = vmatpush1.msra.mxu0 0.0
  %276 = vmatprep.subr.mxu0 0.0
  %277 = vmatpush1.msra.mxu0 0.0
  %278 = vmatprep.subr.mxu0 0.0
  %279 = vmatpush1.msra.mxu0 0.0
  %280 = vmatprep.subr.mxu0 0.0
  %281 = vmatpush1.msra.mxu0 0.0
  %282 = vmatprep.subr.mxu0 0.0
  %283 = vmatpush1.msra.mxu0 0.0
  %284 = vmatprep.subr.mxu0 0.0
  %285 = vmatpush1.msra.mxu0 0.0
  %286 = vmatprep.subr.mxu0 0.0
  %287 = vmatpush1.msra.mxu0 0.0
  %288 = vmatprep.subr.mxu0 0.0
  %289 = vmatpush1.msra.mxu0 0.0
  %290 = vmatprep.subr.mxu0 0.0
  %291 = vmatpush1.msra.mxu0 0.0
  %292 = vmatprep.subr.mxu0 0.0
  %293 = vmatpush1.msra.mxu0 0.0
  %294 = vmatprep.subr.mxu0 0.0
  %295 = vmatpush1.msra.mxu0 0.0
  %296 = vmatprep.subr.mxu0 0.0
  %297 = vmatpush1.msra.mxu0 0.0
  %298 = vmatprep.subr.mxu0 0.0
  %299 = vmatpush1.msra.mxu0 0.0
  %300 = vmatprep.subr.mxu0 0.0
  %301 = vmatpush1.msra.mxu0 0.0
  %302 = vmatprep.subr.mxu0 0.0
  %303 = vmatpush1.msra.mxu0 0.0
  %304 = vmatprep.subr.mxu0 0.0
  %305 = vmatpush1.msra.mxu0 0.0
  %306 = vmatprep.subr.mxu0 0.0
  %307 = vmatpush1.msra.mxu0 0.0
  %308 = vmatprep.subr.mxu0 0.0
  %309 = vmatpush1.msra.mxu0 0.0
  %310 = vmatprep.subr.mxu0 0.0
  %311 = vmatpush1.msra.mxu0 0.0
  %312 = vmatprep.subr.mxu0 0.0
  %313 = vmatpush1.msra.mxu0 0.0
  %314 = vmatprep.subr.mxu0 0.0
  %315 = vmatpush1.msra.mxu0 0.0
  %316 = vmatprep.mubr.f32.mxu0 0.0
  %317 = vmatmul.mubr.f32.gmra.mrb[0].mxu0 %v247
  %v318 = vpop.f32.mrb[0].mxu0
  %v319 = vadd.f32 %v239, %v318
  %v320 = vpop.f32.mrb[0].mxu0
  %321 = vmatprep.mubr.f32.mxu0 0.0
  %322 = vmatmul.mubr.f32.gmra.mrb[0].mxu0 %v250
  %v323 = vpop.f32.mrb[0].mxu0
  %v324 = vadd.f32 %v243, %v323
  %v325 = vpop.f32.mrb[0].mxu0
  %326 = vdwg.mxu0
  %v327 = vmax.f32 %v319, 0.0
  %v328 = vmax.f32 %v324, 0.0
  %329 = vset.pattern.permute.xlu0 4
  %330 = vperm.xlu0 %329, %v65
  %v331 = vpop.permute.xlu0 %330
  %333 = vset.pattern.permute.xlu0 4
  %334 = vperm.xlu0 %333, %v66
  %v335 = vpop.permute.xlu0 %334
  %v337 = vmul.f32 %v327, %v331
  %v338 = vmul.f32 %v328, %v335
  %339 = vset.pattern.permute.xlu0 5
  %340 = vperm.xlu0 %339, %v65
  %v341 = vpop.permute.xlu0 %340
  %343 = vset.pattern.permute.xlu0 5
  %344 = vperm.xlu0 %343, %v66
  %v345 = vpop.permute.xlu0 %344
  %v347 = vadd.f32 %v337, %v341
  %v348 = vadd.f32 %v338, %v345
  %v349 = vadd.f32 %v347, %v199
  %v350 = vadd.f32 %v348, %v200
  %v351 = vmax.f32 %v349, 0.0
  %v352 = vmax.f32 %v350, 0.0
  %v353 = vld [vmem:[%s6] sm:$0xff]
  %v354 = vld [vmem:[%s6 + $0x8] sm:$0xff]
  %v355 = vld [vmem:[%s6 + $0x10] sm:$0xff]
  %v356 = vld [vmem:[%s6 + $0x18] sm:$0xff]
  %v357 = vld [vmem:[%s4] sm:$0xff]
  %v358 = vld [vmem:[%s4 + $0x8] sm:$0xff]
  %v359 = vld [vmem:[%s4 + $0x10] sm:$0xff]
  %v360 = vld [vmem:[%s4 + $0x18] sm:$0xff]
  %v361 = vld [vmem:[%s4 + $0x20] sm:$0xff]
  %v362 = vld [vmem:[%s4 + $0x28] sm:$0xff]
  %v363 = vld [vmem:[%s4 + $0x30] sm:$0xff]
  %v364 = vld [vmem:[%s4 + $0x38] sm:$0xff]
  %365 = vrot.lane.b32.xlu0 %v351, 2
  %v366 = vpop.permute.xlu0 %365
  %367 = vrot.lane.b32.xlu0 %v352, 2
  %v368 = vpop.permute.xlu0 %367
  %v369 = vsel %vm79, %v366, 0.0
  %v370 = vsel %vm79, %v368, 0.0
  %371 = vrot.lane.b32.xlu0 %v351, 4
  %v372 = vpop.permute.xlu0 %371
  %373 = vrot.lane.b32.xlu0 %v352, 4
  %v374 = vpop.permute.xlu0 %373
  %v375 = vsel %vm63, 1, 0
  %vm376 = vcmp.eq.s32.totalorder %v375, 1
  %v377 = vsel %vm376, %v372, 0.0
  %v378 = vsel %vm376, %v374, 0.0
  %v380 = vsel %vm245, %v357, 0
  %v383 = vsel %vm245, %v358, 0
  %v386 = vsel %vm245, %v359, 0
  %v389 = vsel %vm245, %v360, 0
  %v392 = vsel %vm245, %v361, 0
  %v395 = vsel %vm245, %v362, 0
  %v398 = vsel %vm245, %v363, 0
  %v401 = vsel %vm245, %v364, 0
  %403 = vmatprep.subr.mxu0 0.0
  %404 = vmatpush1.msra.mxu0 %v351
  %405 = vmatprep.subr.mxu0 0.0
  %406 = vmatpush1.msra.mxu0 %v352
  %407 = vmatprep.subr.mxu0 0.0
  %408 = vmatpush1.msra.mxu0 %v369
  %409 = vmatprep.subr.mxu0 0.0
  %410 = vmatpush1.msra.mxu0 %v370
  %411 = vmatprep.subr.mxu0 0.0
  %412 = vmatpush1.msra.mxu0 %v377
  %413 = vmatprep.subr.mxu0 0.0
  %414 = vmatpush1.msra.mxu0 %v378
  %415 = vmatprep.subr.mxu0 0.0
  %416 = vmatpush1.msra.mxu0 0.0
  %417 = vmatprep.subr.mxu0 0.0
  %418 = vmatpush1.msra.mxu0 0.0
  %419 = vmatprep.subr.mxu0 0.0
  %420 = vmatpush1.msra.mxu0 0.0
  %421 = vmatprep.subr.mxu0 0.0
  %422 = vmatpush1.msra.mxu0 0.0
  %423 = vmatprep.subr.mxu0 0.0
  %424 = vmatpush1.msra.mxu0 0.0
  %425 = vmatprep.subr.mxu0 0.0
  %426 = vmatpush1.msra.mxu0 0.0
  %427 = vmatprep.subr.mxu0 0.0
  %428 = vmatpush1.msra.mxu0 0.0
  %429 = vmatprep.subr.mxu0 0.0
  %430 = vmatpush1.msra.mxu0 0.0
  %431 = vmatprep.subr.mxu0 0.0
  %432 = vmatpush1.msra.mxu0 0.0
  %433 = vmatprep.subr.mxu0 0.0
  %434 = vmatpush1.msra.mxu0 0.0
  %435 = vmatprep.subr.mxu0 0.0
  %436 = vmatpush1.msra.mxu0 0.0
  %437 = vmatprep.subr.mxu0 0.0
  %438 = vmatpush1.msra.mxu0 0.0
  %439 = vmatprep.subr.mxu0 0.0
  %440 = vmatpush1.msra.mxu0 0.0
  %441 = vmatprep.subr.mxu0 0.0
  %442 = vmatpush1.msra.mxu0 0.0
  %443 = vmatprep.subr.mxu0 0.0
  %444 = vmatpush1.msra.mxu0 0.0
  %445 = vmatprep.subr.mxu0 0.0
  %446 = vmatpush1.msra.mxu0 0.0
  %447 = vmatprep.subr.mxu0 0.0
  %448 = vmatpush1.msra.mxu0 0.0
  %449 = vmatprep.subr.mxu0 0.0
  %450 = vmatpush1.msra.mxu0 0.0
  %451 = vmatprep.subr.mxu0 0.0
  %452 = vmatpush1.msra.mxu0 0.0
  %453 = vmatprep.subr.mxu0 0.0
  %454 = vmatpush1.msra.mxu0 0.0
  %455 = vmatprep.subr.mxu0 0.0
  %456 = vmatpush1.msra.mxu0 0.0
  %457 = vmatprep.subr.mxu0 0.0
  %458 = vmatpush1.msra.mxu0 0.0
  %459 = vmatprep.subr.mxu0 0.0
  %460 = vmatpush1.msra.mxu0 0.0
  %461 = vmatprep.subr.mxu0 0.0
  %462 = vmatpush1.msra.mxu0 0.0
  %463 = vmatprep.subr.mxu0 0.0
  %464 = vmatpush1.msra.mxu0 0.0
  %465 = vmatprep.subr.mxu0 0.0
  %466 = vmatpush1.msra.mxu0 0.0
  %467 = vmatprep.mubr.f32.mxu0 0.0
  %468 = vmatmul.mubr.f32.gmra.mrb[0].mxu0 %v380
  %v469 = vpop.f32.mrb[0].mxu0
  %v470 = vadd.f32 0.0, %v469
  %v471 = vpop.f32.mrb[0].mxu0
  %472 = vmatprep.mubr.f32.mxu0 0.0
  %473 = vmatmul.mubr.f32.gmra.mrb[0].mxu0 %v383
  %v474 = vpop.f32.mrb[0].mxu0
  %v475 = vadd.f32 0.0, %v474
  %v476 = vpop.f32.mrb[0].mxu0
  %477 = vmatprep.mubr.f32.mxu0 0.0
  %478 = vmatmul.mubr.f32.gmra.mrb[0].mxu0 %v386
  %v479 = vpop.f32.mrb[0].mxu0
  %v480 = vadd.f32 0.0, %v479
  %v481 = vpop.f32.mrb[0].mxu0
  %482 = vmatprep.mubr.f32.mxu0 0.0
  %483 = vmatmul.mubr.f32.gmra.mrb[0].mxu0 %v389
  %v484 = vpop.f32.mrb[0].mxu0
  %v485 = vadd.f32 0.0, %v484
  %v486 = vpop.f32.mrb[0].mxu0
  %487 = vmatprep.mubr.f32.mxu0 0.0
  %488 = vmatmul.mubr.f32.gmra.mrb[0].mxu0 %v392
  %v489 = vpop.f32.mrb[0].mxu0
  %v490 = vadd.f32 0.0, %v489
  %v491 = vpop.f32.mrb[0].mxu0
  %492 = vmatprep.mubr.f32.mxu0 0.0
  %493 = vmatmul.mubr.f32.gmra.mrb[0].mxu0 %v395
  %v494 = vpop.f32.mrb[0].mxu0
  %v495 = vadd.f32 0.0, %v494
  %v496 = vpop.f32.mrb[0].mxu0
  %497 = vmatprep.mubr.f32.mxu0 0.0
  %498 = vmatmul.mubr.f32.gmra.mrb[0].mxu0 %v398
  %v499 = vpop.f32.mrb[0].mxu0
  %v500 = vadd.f32 0.0, %v499
  %v501 = vpop.f32.mrb[0].mxu0
  %502 = vmatprep.mubr.f32.mxu0 0.0
  %503 = vmatmul.mubr.f32.gmra.mrb[0].mxu0 %v401
  %v504 = vpop.f32.mrb[0].mxu0
  %v505 = vadd.f32 0.0, %v504
  %v506 = vpop.f32.mrb[0].mxu0
  %507 = vdwg.mxu0
  %509 = vset.pattern.permute.xlu0 0
  %510 = vperm.xlu0 %509, %v353
  %v511 = vpop.permute.xlu0 %510
  %514 = vset.pattern.permute.xlu0 0
  %515 = vperm.xlu0 %514, %v354
  %v516 = vpop.permute.xlu0 %515
  %519 = vset.pattern.permute.xlu0 0
  %520 = vperm.xlu0 %519, %v355
  %v521 = vpop.permute.xlu0 %520
  %524 = vset.pattern.permute.xlu0 0
  %525 = vperm.xlu0 %524, %v356
  %v526 = vpop.permute.xlu0 %525
  %v528 = vadd.f32 %v470, %v511
  %v529 = vadd.f32 %v475, %v516
  %v530 = vadd.f32 %v480, %v521
  %v531 = vadd.f32 %v485, %v526
  %532 = vset.pattern.permute.xlu0 6
  %533 = vperm.xlu0 %532, %v353
  %v534 = vpop.permute.xlu0 %533
  %536 = vset.pattern.permute.xlu0 6
  %537 = vperm.xlu0 %536, %v354
  %v538 = vpop.permute.xlu0 %537
  %540 = vset.pattern.permute.xlu0 6
  %541 = vperm.xlu0 %540, %v355
  %v542 = vpop.permute.xlu0 %541
  %544 = vset.pattern.permute.xlu0 6
  %545 = vperm.xlu0 %544, %v356
  %v546 = vpop.permute.xlu0 %545
  %v548 = vadd.f32 %v490, %v534
  %v549 = vadd.f32 %v495, %v538
  %v550 = vadd.f32 %v500, %v542
  %v551 = vadd.f32 %v505, %v546
  %v552 = vmax.f32 %v528, 0.0
  %v553 = vmax.f32 %v529, 0.0
  %v554 = vmax.f32 %v530, 0.0
  %v555 = vmax.f32 %v531, 0.0
  %556 = vset.pattern.permute.xlu0 1
  %557 = vperm.xlu0 %556, %v353
  %v558 = vpop.permute.xlu0 %557
  %560 = vset.pattern.permute.xlu0 1
  %561 = vperm.xlu0 %560, %v354
  %v562 = vpop.permute.xlu0 %561
  %564 = vset.pattern.permute.xlu0 1
  %565 = vperm.xlu0 %564, %v355
  %v566 = vpop.permute.xlu0 %565
  %568 = vset.pattern.permute.xlu0 1
  %569 = vperm.xlu0 %568, %v356
  %v570 = vpop.permute.xlu0 %569
  %v572 = vmul.f32 %v552, %v558
  %v573 = vmul.f32 %v553, %v562
  %v574 = vmul.f32 %v554, %v566
  %v575 = vmul.f32 %v555, %v570
  %576 = vset.pattern.permute.xlu0 2
  %577 = vperm.xlu0 %576, %v353
  %v578 = vpop.permute.xlu0 %577
  %580 = vset.pattern.permute.xlu0 2
  %581 = vperm.xlu0 %580, %v354
  %v582 = vpop.permute.xlu0 %581
  %584 = vset.pattern.permute.xlu0 2
  %585 = vperm.xlu0 %584, %v355
  %v586 = vpop.permute.xlu0 %585
  %588 = vset.pattern.permute.xlu0 2
  %589 = vperm.xlu0 %588, %v356
  %v590 = vpop.permute.xlu0 %589
  %v592 = vadd.f32 %v572, %v578
  %v593 = vadd.f32 %v573, %v582
  %v594 = vadd.f32 %v574, %v586
  %v595 = vadd.f32 %v575, %v590
  %v596 = vld [vmem:[%s5] sm:$0xff]
  %v597 = vld [vmem:[%s5 + $0x8] sm:$0xff]
  %v598 = vld [vmem:[%s5 + $0x10] sm:$0xff]
  %v599 = vld [vmem:[%s5 + $0x18] sm:$0xff]
  %600 = vrot.lane.b32.xlu0 %v592, 2
  %v601 = vpop.permute.xlu0 %600
  %602 = vrot.lane.b32.xlu0 %v593, 2
  %v603 = vpop.permute.xlu0 %602
  %604 = vrot.lane.b32.xlu0 %v594, 2
  %v605 = vpop.permute.xlu0 %604
  %606 = vrot.lane.b32.xlu0 %v595, 2
  %v607 = vpop.permute.xlu0 %606
  %v608 = vsel %vm79, %v601, 0.0
  %v609 = vsel %vm79, %v603, 0.0
  %v610 = vsel %vm79, %v605, 0.0
  %v611 = vsel %vm79, %v607, 0.0
  %612 = vrot.lane.b32.xlu0 %v592, 4
  %v613 = vpop.permute.xlu0 %612
  %614 = vrot.lane.b32.xlu0 %v593, 4
  %v615 = vpop.permute.xlu0 %614
  %616 = vrot.lane.b32.xlu0 %v594, 4
  %v617 = vpop.permute.xlu0 %616
  %618 = vrot.lane.b32.xlu0 %v595, 4
  %v619 = vpop.permute.xlu0 %618
  %v620 = vsel %vm376, %v613, 0.0
  %v621 = vsel %vm376, %v615, 0.0
  %v622 = vsel %vm376, %v617, 0.0
  %v623 = vsel %vm376, %v619, 0.0
  %624 = vset.pattern.permute.xlu0 3
  %625 = vperm.xlu0 %624, %v353
  %v626 = vpop.permute.xlu0 %625
  %628 = vset.pattern.permute.xlu0 3
  %629 = vperm.xlu0 %628, %v354
  %v630 = vpop.permute.xlu0 %629
  %632 = vset.pattern.permute.xlu0 3
  %633 = vperm.xlu0 %632, %v355
  %v634 = vpop.permute.xlu0 %633
  %636 = vset.pattern.permute.xlu0 3
  %637 = vperm.xlu0 %636, %v356
  %v638 = vpop.permute.xlu0 %637
  %vm640 = vcmask 785408
  %v642 = vsel %vm640, %v596, 0
  %v645 = vsel %vm640, %v597, 0
  %v648 = vsel %vm640, %v598, 0
  %v651 = vsel %vm640, %v599, 0
  %653 = vmatprep.subr.mxu0 0.0
  %654 = vmatpush1.msra.mxu0 %v592
  %655 = vmatprep.subr.mxu0 0.0
  %656 = vmatpush1.msra.mxu0 %v593
  %657 = vmatprep.subr.mxu0 0.0
  %658 = vmatpush1.msra.mxu0 %v594
  %659 = vmatprep.subr.mxu0 0.0
  %660 = vmatpush1.msra.mxu0 %v595
  %661 = vmatprep.subr.mxu0 0.0
  %662 = vmatpush1.msra.mxu0 %v608
  %663 = vmatprep.subr.mxu0 0.0
  %664 = vmatpush1.msra.mxu0 %v609
  %665 = vmatprep.subr.mxu0 0.0
  %666 = vmatpush1.msra.mxu0 %v610
  %667 = vmatprep.subr.mxu0 0.0
  %668 = vmatpush1.msra.mxu0 %v611
  %669 = vmatprep.subr.mxu0 0.0
  %670 = vmatpush1.msra.mxu0 %v620
  %671 = vmatprep.subr.mxu0 0.0
  %672 = vmatpush1.msra.mxu0 %v621
  %673 = vmatprep.subr.mxu0 0.0
  %674 = vmatpush1.msra.mxu0 %v622
  %675 = vmatprep.subr.mxu0 0.0
  %676 = vmatpush1.msra.mxu0 %v623
  %677 = vmatprep.subr.mxu0 0.0
  %678 = vmatpush1.msra.mxu0 0.0
  %679 = vmatprep.subr.mxu0 0.0
  %680 = vmatpush1.msra.mxu0 0.0
  %681 = vmatprep.subr.mxu0 0.0
  %682 = vmatpush1.msra.mxu0 0.0
  %683 = vmatprep.subr.mxu0 0.0
  %684 = vmatpush1.msra.mxu0 0.0
  %685 = vmatprep.subr.mxu0 0.0
  %686 = vmatpush1.msra.mxu0 0.0
  %687 = vmatprep.subr.mxu0 0.0
  %688 = vmatpush1.msra.mxu0 0.0
  %689 = vmatprep.subr.mxu0 0.0
  %690 = vmatpush1.msra.mxu0 0.0
  %691 = vmatprep.subr.mxu0 0.0
  %692 = vmatpush1.msra.mxu0 0.0
  %693 = vmatprep.subr.mxu0 0.0
  %694 = vmatpush1.msra.mxu0 0.0
  %695 = vmatprep.subr.mxu0 0.0
  %696 = vmatpush1.msra.mxu0 0.0
  %697 = vmatprep.subr.mxu0 0.0
  %698 = vmatpush1.msra.mxu0 0.0
  %699 = vmatprep.subr.mxu0 0.0
  %700 = vmatpush1.msra.mxu0 0.0
  %701 = vmatprep.subr.mxu0 0.0
  %702 = vmatpush1.msra.mxu0 0.0
  %703 = vmatprep.subr.mxu0 0.0
  %704 = vmatpush1.msra.mxu0 0.0
  %705 = vmatprep.subr.mxu0 0.0
  %706 = vmatpush1.msra.mxu0 0.0
  %707 = vmatprep.subr.mxu0 0.0
  %708 = vmatpush1.msra.mxu0 0.0
  %709 = vmatprep.subr.mxu0 0.0
  %710 = vmatpush1.msra.mxu0 0.0
  %711 = vmatprep.subr.mxu0 0.0
  %712 = vmatpush1.msra.mxu0 0.0
  %713 = vmatprep.subr.mxu0 0.0
  %714 = vmatpush1.msra.mxu0 0.0
  %715 = vmatprep.subr.mxu0 0.0
  %716 = vmatpush1.msra.mxu0 0.0
  %717 = vmatprep.mubr.f32.mxu0 0.0
  %718 = vmatmul.mubr.f32.gmra.mrb[0].mxu0 %v642
  %v719 = vpop.f32.mrb[0].mxu0
  %v720 = vadd.f32 %v626, %v719
  %v721 = vpop.f32.mrb[0].mxu0
  %722 = vmatprep.mubr.f32.mxu0 0.0
  %723 = vmatmul.mubr.f32.gmra.mrb[0].mxu0 %v645
  %v724 = vpop.f32.mrb[0].mxu0
  %v725 = vadd.f32 %v630, %v724
  %v726 = vpop.f32.mrb[0].mxu0
  %727 = vmatprep.mubr.f32.mxu0 0.0
  %728 = vmatmul.mubr.f32.gmra.mrb[0].mxu0 %v648
  %v729 = vpop.f32.mrb[0].mxu0
  %v730 = vadd.f32 %v634, %v729
  %v731 = vpop.f32.mrb[0].mxu0
  %732 = vmatprep.mubr.f32.mxu0 0.0
  %733 = vmatmul.mubr.f32.gmra.mrb[0].mxu0 %v651
  %v734 = vpop.f32.mrb[0].mxu0
  %v735 = vadd.f32 %v638, %v734
  %v736 = vpop.f32.mrb[0].mxu0
  %737 = vdwg.mxu0
  %v738 = vmax.f32 %v720, 0.0
  %v739 = vmax.f32 %v725, 0.0
  %v740 = vmax.f32 %v730, 0.0
  %v741 = vmax.f32 %v735, 0.0
  %742 = vset.pattern.permute.xlu0 4
  %743 = vperm.xlu0 %742, %v353
  %v744 = vpop.permute.xlu0 %743
  %746 = vset.pattern.permute.xlu0 4
  %747 = vperm.xlu0 %746, %v354
  %v748 = vpop.permute.xlu0 %747
  %750 = vset.pattern.permute.xlu0 4
  %751 = vperm.xlu0 %750, %v355
  %v752 = vpop.permute.xlu0 %751
  %754 = vset.pattern.permute.xlu0 4
  %755 = vperm.xlu0 %754, %v356
  %v756 = vpop.permute.xlu0 %755
  %v758 = vmul.f32 %v738, %v744
  %v759 = vmul.f32 %v739, %v748
  %v760 = vmul.f32 %v740, %v752
  %v761 = vmul.f32 %v741, %v756
  %762 = vset.pattern.permute.xlu0 5
  %763 = vperm.xlu0 %762, %v353
  %v764 = vpop.permute.xlu0 %763
  %766 = vset.pattern.permute.xlu0 5
  %767 = vperm.xlu0 %766, %v354
  %v768 = vpop.permute.xlu0 %767
  %770 = vset.pattern.permute.xlu0 5
  %771 = vperm.xlu0 %770, %v355
  %v772 = vpop.permute.xlu0 %771
  %774 = vset.pattern.permute.xlu0 5
  %775 = vperm.xlu0 %774, %v356
  %v776 = vpop.permute.xlu0 %775
  %v778 = vadd.f32 %v758, %v764
  %v779 = vadd.f32 %v759, %v768
  %v780 = vadd.f32 %v760, %v772
  %v781 = vadd.f32 %v761, %v776
  %v782 = vadd.f32 %v778, %v548
  %v783 = vadd.f32 %v779, %v549
  %v784 = vadd.f32 %v780, %v550
  %v785 = vadd.f32 %v781, %v551
  %v786 = vmax.f32 %v782, 0.0
  %v787 = vmax.f32 %v783, 0.0
  %v788 = vmax.f32 %v784, 0.0
  %v789 = vmax.f32 %v785, 0.0
  %v790 = vld [vmem:[%s7] sm:$0xff]
  %v791 = vld [vmem:[%s8] sm:$0xff]
  %793 = vset.pattern.permute.xlu0 0
  %794 = vperm.xlu0 %793, %v791
  %v795 = vpop.permute.xlu0 %794
  %vm797 = vcmask 261120
  %v799 = vsel %vm797, %v790, 0
  %801 = vmatprep.subr.mxu0 0.0
  %802 = vmatpush1.msra.mxu0 %v786
  %803 = vmatprep.subr.mxu0 0.0
  %804 = vmatpush1.msra.mxu0 %v787
  %805 = vmatprep.subr.mxu0 0.0
  %806 = vmatpush1.msra.mxu0 %v788
  %807 = vmatprep.subr.mxu0 0.0
  %808 = vmatpush1.msra.mxu0 %v789
  %809 = vmatprep.subr.mxu0 0.0
  %810 = vmatpush1.msra.mxu0 0.0
  %811 = vmatprep.subr.mxu0 0.0
  %812 = vmatpush1.msra.mxu0 0.0
  %813 = vmatprep.subr.mxu0 0.0
  %814 = vmatpush1.msra.mxu0 0.0
  %815 = vmatprep.subr.mxu0 0.0
  %816 = vmatpush1.msra.mxu0 0.0
  %817 = vmatprep.subr.mxu0 0.0
  %818 = vmatpush1.msra.mxu0 0.0
  %819 = vmatprep.subr.mxu0 0.0
  %820 = vmatpush1.msra.mxu0 0.0
  %821 = vmatprep.subr.mxu0 0.0
  %822 = vmatpush1.msra.mxu0 0.0
  %823 = vmatprep.subr.mxu0 0.0
  %824 = vmatpush1.msra.mxu0 0.0
  %825 = vmatprep.subr.mxu0 0.0
  %826 = vmatpush1.msra.mxu0 0.0
  %827 = vmatprep.subr.mxu0 0.0
  %828 = vmatpush1.msra.mxu0 0.0
  %829 = vmatprep.subr.mxu0 0.0
  %830 = vmatpush1.msra.mxu0 0.0
  %831 = vmatprep.subr.mxu0 0.0
  %832 = vmatpush1.msra.mxu0 0.0
  %833 = vmatprep.subr.mxu0 0.0
  %834 = vmatpush1.msra.mxu0 0.0
  %835 = vmatprep.subr.mxu0 0.0
  %836 = vmatpush1.msra.mxu0 0.0
  %837 = vmatprep.subr.mxu0 0.0
  %838 = vmatpush1.msra.mxu0 0.0
  %839 = vmatprep.subr.mxu0 0.0
  %840 = vmatpush1.msra.mxu0 0.0
  %841 = vmatprep.subr.mxu0 0.0
  %842 = vmatpush1.msra.mxu0 0.0
  %843 = vmatprep.subr.mxu0 0.0
  %844 = vmatpush1.msra.mxu0 0.0
  %845 = vmatprep.subr.mxu0 0.0
  %846 = vmatpush1.msra.mxu0 0.0
  %847 = vmatprep.subr.mxu0 0.0
  %848 = vmatpush1.msra.mxu0 0.0
  %849 = vmatprep.subr.mxu0 0.0
  %850 = vmatpush1.msra.mxu0 0.0
  %851 = vmatprep.subr.mxu0 0.0
  %852 = vmatpush1.msra.mxu0 0.0
  %853 = vmatprep.subr.mxu0 0.0
  %854 = vmatpush1.msra.mxu0 0.0
  %855 = vmatprep.subr.mxu0 0.0
  %856 = vmatpush1.msra.mxu0 0.0
  %857 = vmatprep.subr.mxu0 0.0
  %858 = vmatpush1.msra.mxu0 0.0
  %859 = vmatprep.subr.mxu0 0.0
  %860 = vmatpush1.msra.mxu0 0.0
  %861 = vmatprep.subr.mxu0 0.0
  %862 = vmatpush1.msra.mxu0 0.0
  %863 = vmatprep.subr.mxu0 0.0
  %864 = vmatpush1.msra.mxu0 0.0
  %865 = vmatprep.mubr.f32.mxu0 0.0
  %866 = vmatmul.mubr.f32.gmra.mrb[0].mxu0 %v799
  %v867 = vpop.f32.mrb[0].mxu0
  %v868 = vadd.f32 %v795, %v867
  %v869 = vpop.f32.mrb[0].mxu0
  %870 = vdwg.mxu0
  %v871 = vmul.f32 %v868, %v868
  %v872 = vrot.slane %v871, 4
  %v873 = vadd.f32 %v871, %v872
  %v874 = vrot.slane %v873, 2
  %v875 = vadd.f32 %v873, %v874
  %v876 = vrot.slane %v875, 1
  %v877 = vadd.f32 %v875, %v876
  %v878 = vrsqrt.pop %v877
  %v879 = vmul.f32 %v877, %v878
  %vm880 = vcmp.eq.f32.partialorder %v877, inf
  %v881 = vsel %vm880, %v877, %v879
  %vm882 = vcmp.eq.f32.partialorder %v877, 0.0
  %v883 = vand.u32 %v877, 2147483648
  %v884 = vsel %vm882, %v883, %v881
  %v885 = vmax.f32 %v884, 1e-12
  %v886 = vrcp.pop %v885
  %v887 = vmul.f32 %v868, %v886
  %888 = vst [vmem:[%s18] sm:$0xff] %v887
  %v889 = vld [vmem:[%s9] sm:$0xff]
  %v890 = vld [vmem:[%s9 + $0x8] sm:$0xff]
  %v891 = vld [vmem:[%s9 + $0x10] sm:$0xff]
  %v892 = vld [vmem:[%s9 + $0x18] sm:$0xff]
  %v893 = vld [vmem:[%s10] sm:$0xff]
  %v894 = vld [vmem:[%s10 + $0x8] sm:$0xff]
  %v895 = vld [vmem:[%s10 + $0x10] sm:$0xff]
  %v896 = vld [vmem:[%s10 + $0x18] sm:$0xff]
  %898 = vset.pattern.permute.xlu0 0
  %899 = vperm.xlu0 %898, %v893
  %v900 = vpop.permute.xlu0 %899
  %903 = vset.pattern.permute.xlu0 0
  %904 = vperm.xlu0 %903, %v894
  %v905 = vpop.permute.xlu0 %904
  %908 = vset.pattern.permute.xlu0 0
  %909 = vperm.xlu0 %908, %v895
  %v910 = vpop.permute.xlu0 %909
  %913 = vset.pattern.permute.xlu0 0
  %914 = vperm.xlu0 %913, %v896
  %v915 = vpop.permute.xlu0 %914
  %vm917 = vcmask 64512
  %v919 = vsel %vm917, %v889, 0
  %v922 = vsel %vm917, %v890, 0
  %v925 = vsel %vm917, %v891, 0
  %v928 = vsel %vm917, %v892, 0
  %930 = vmatprep.subr.mxu0 0.0
  %931 = vmatpush1.msra.mxu0 %v887
  %932 = vmatprep.subr.mxu0 0.0
  %933 = vmatpush1.msra.mxu0 0.0
  %934 = vmatprep.subr.mxu0 0.0
  %935 = vmatpush1.msra.mxu0 0.0
  %936 = vmatprep.subr.mxu0 0.0
  %937 = vmatpush1.msra.mxu0 0.0
  %938 = vmatprep.subr.mxu0 0.0
  %939 = vmatpush1.msra.mxu0 0.0
  %940 = vmatprep.subr.mxu0 0.0
  %941 = vmatpush1.msra.mxu0 0.0
  %942 = vmatprep.subr.mxu0 0.0
  %943 = vmatpush1.msra.mxu0 0.0
  %944 = vmatprep.subr.mxu0 0.0
  %945 = vmatpush1.msra.mxu0 0.0
  %946 = vmatprep.subr.mxu0 0.0
  %947 = vmatpush1.msra.mxu0 0.0
  %948 = vmatprep.subr.mxu0 0.0
  %949 = vmatpush1.msra.mxu0 0.0
  %950 = vmatprep.subr.mxu0 0.0
  %951 = vmatpush1.msra.mxu0 0.0
  %952 = vmatprep.subr.mxu0 0.0
  %953 = vmatpush1.msra.mxu0 0.0
  %954 = vmatprep.subr.mxu0 0.0
  %955 = vmatpush1.msra.mxu0 0.0
  %956 = vmatprep.subr.mxu0 0.0
  %957 = vmatpush1.msra.mxu0 0.0
  %958 = vmatprep.subr.mxu0 0.0
  %959 = vmatpush1.msra.mxu0 0.0
  %960 = vmatprep.subr.mxu0 0.0
  %961 = vmatpush1.msra.mxu0 0.0
  %962 = vmatprep.subr.mxu0 0.0
  %963 = vmatpush1.msra.mxu0 0.0
  %964 = vmatprep.subr.mxu0 0.0
  %965 = vmatpush1.msra.mxu0 0.0
  %966 = vmatprep.subr.mxu0 0.0
  %967 = vmatpush1.msra.mxu0 0.0
  %968 = vmatprep.subr.mxu0 0.0
  %969 = vmatpush1.msra.mxu0 0.0
  %970 = vmatprep.subr.mxu0 0.0
  %971 = vmatpush1.msra.mxu0 0.0
  %972 = vmatprep.subr.mxu0 0.0
  %973 = vmatpush1.msra.mxu0 0.0
  %974 = vmatprep.subr.mxu0 0.0
  %975 = vmatpush1.msra.mxu0 0.0
  %976 = vmatprep.subr.mxu0 0.0
  %977 = vmatpush1.msra.mxu0 0.0
  %978 = vmatprep.subr.mxu0 0.0
  %979 = vmatpush1.msra.mxu0 0.0
  %980 = vmatprep.subr.mxu0 0.0
  %981 = vmatpush1.msra.mxu0 0.0
  %982 = vmatprep.subr.mxu0 0.0
  %983 = vmatpush1.msra.mxu0 0.0
  %984 = vmatprep.subr.mxu0 0.0
  %985 = vmatpush1.msra.mxu0 0.0
  %986 = vmatprep.subr.mxu0 0.0
  %987 = vmatpush1.msra.mxu0 0.0
  %988 = vmatprep.subr.mxu0 0.0
  %989 = vmatpush1.msra.mxu0 0.0
  %990 = vmatprep.subr.mxu0 0.0
  %991 = vmatpush1.msra.mxu0 0.0
  %992 = vmatprep.subr.mxu0 0.0
  %993 = vmatpush1.msra.mxu0 0.0
  %994 = vmatprep.mubr.f32.mxu0 0.0
  %995 = vmatmul.mubr.f32.gmra.mrb[0].mxu0 %v919
  %v996 = vpop.f32.mrb[0].mxu0
  %v997 = vadd.f32 %v900, %v996
  %v998 = vpop.f32.mrb[0].mxu0
  %999 = vmatprep.mubr.f32.mxu0 0.0
  %1000 = vmatmul.mubr.f32.gmra.mrb[0].mxu0 %v922
  %v1001 = vpop.f32.mrb[0].mxu0
  %v1002 = vadd.f32 %v905, %v1001
  %v1003 = vpop.f32.mrb[0].mxu0
  %1004 = vmatprep.mubr.f32.mxu0 0.0
  %1005 = vmatmul.mubr.f32.gmra.mrb[0].mxu0 %v925
  %v1006 = vpop.f32.mrb[0].mxu0
  %v1007 = vadd.f32 %v910, %v1006
  %v1008 = vpop.f32.mrb[0].mxu0
  %1009 = vmatprep.mubr.f32.mxu0 0.0
  %1010 = vmatmul.mubr.f32.gmra.mrb[0].mxu0 %v928
  %v1011 = vpop.f32.mrb[0].mxu0
  %v1012 = vadd.f32 %v915, %v1011
  %v1013 = vpop.f32.mrb[0].mxu0
  %1014 = vdwg.mxu0
  %v1015 = vld [vmem:[%s13] sm:$0xff]
  %v1016 = vld [vmem:[%s13 + $0x8] sm:$0xff]
  %v1017 = vld [vmem:[%s11] sm:$0xff]
  %v1018 = vld [vmem:[%s11 + $0x8] sm:$0xff]
  %v1019 = vld [vmem:[%s11 + $0x10] sm:$0xff]
  %v1020 = vld [vmem:[%s11 + $0x18] sm:$0xff]
  %1021 = vrot.lane.b32.xlu0 %v997, 2
  %v1022 = vpop.permute.xlu0 %1021
  %1023 = vrot.lane.b32.xlu0 %v1002, 2
  %v1024 = vpop.permute.xlu0 %1023
  %1025 = vrot.lane.b32.xlu0 %v1007, 2
  %v1026 = vpop.permute.xlu0 %1025
  %1027 = vrot.lane.b32.xlu0 %v1012, 2
  %v1028 = vpop.permute.xlu0 %1027
  %v1029 = vsel %vm79, %v1022, 0.0
  %v1030 = vsel %vm79, %v1024, 0.0
  %v1031 = vsel %vm79, %v1026, 0.0
  %v1032 = vsel %vm79, %v1028, 0.0
  %1033 = vrot.lane.b32.xlu0 %v997, 4
  %v1034 = vpop.permute.xlu0 %1033
  %1035 = vrot.lane.b32.xlu0 %v1002, 4
  %v1036 = vpop.permute.xlu0 %1035
  %1037 = vrot.lane.b32.xlu0 %v1007, 4
  %v1038 = vpop.permute.xlu0 %1037
  %1039 = vrot.lane.b32.xlu0 %v1012, 4
  %v1040 = vpop.permute.xlu0 %1039
  %v1041 = vsel %vm376, %v1034, 0.0
  %v1042 = vsel %vm376, %v1036, 0.0
  %v1043 = vsel %vm376, %v1038, 0.0
  %v1044 = vsel %vm376, %v1040, 0.0
  %v1046 = vsel %vm640, %v1017, 0
  %v1049 = vsel %vm640, %v1018, 0
  %v1052 = vsel %vm640, %v1019, 0
  %v1055 = vsel %vm640, %v1020, 0
  %1057 = vmatprep.subr.mxu0 0.0
  %1058 = vmatpush1.msra.mxu0 %v997
  %1059 = vmatprep.subr.mxu0 0.0
  %1060 = vmatpush1.msra.mxu0 %v1002
  %1061 = vmatprep.subr.mxu0 0.0
  %1062 = vmatpush1.msra.mxu0 %v1007
  %1063 = vmatprep.subr.mxu0 0.0
  %1064 = vmatpush1.msra.mxu0 %v1012
  %1065 = vmatprep.subr.mxu0 0.0
  %1066 = vmatpush1.msra.mxu0 %v1029
  %1067 = vmatprep.subr.mxu0 0.0
  %1068 = vmatpush1.msra.mxu0 %v1030
  %1069 = vmatprep.subr.mxu0 0.0
  %1070 = vmatpush1.msra.mxu0 %v1031
  %1071 = vmatprep.subr.mxu0 0.0
  %1072 = vmatpush1.msra.mxu0 %v1032
  %1073 = vmatprep.subr.mxu0 0.0
  %1074 = vmatpush1.msra.mxu0 %v1041
  %1075 = vmatprep.subr.mxu0 0.0
  %1076 = vmatpush1.msra.mxu0 %v1042
  %1077 = vmatprep.subr.mxu0 0.0
  %1078 = vmatpush1.msra.mxu0 %v1043
  %1079 = vmatprep.subr.mxu0 0.0
  %1080 = vmatpush1.msra.mxu0 %v1044
  %1081 = vmatprep.subr.mxu0 0.0
  %1082 = vmatpush1.msra.mxu0 0.0
  %1083 = vmatprep.subr.mxu0 0.0
  %1084 = vmatpush1.msra.mxu0 0.0
  %1085 = vmatprep.subr.mxu0 0.0
  %1086 = vmatpush1.msra.mxu0 0.0
  %1087 = vmatprep.subr.mxu0 0.0
  %1088 = vmatpush1.msra.mxu0 0.0
  %1089 = vmatprep.subr.mxu0 0.0
  %1090 = vmatpush1.msra.mxu0 0.0
  %1091 = vmatprep.subr.mxu0 0.0
  %1092 = vmatpush1.msra.mxu0 0.0
  %1093 = vmatprep.subr.mxu0 0.0
  %1094 = vmatpush1.msra.mxu0 0.0
  %1095 = vmatprep.subr.mxu0 0.0
  %1096 = vmatpush1.msra.mxu0 0.0
  %1097 = vmatprep.subr.mxu0 0.0
  %1098 = vmatpush1.msra.mxu0 0.0
  %1099 = vmatprep.subr.mxu0 0.0
  %1100 = vmatpush1.msra.mxu0 0.0
  %1101 = vmatprep.subr.mxu0 0.0
  %1102 = vmatpush1.msra.mxu0 0.0
  %1103 = vmatprep.subr.mxu0 0.0
  %1104 = vmatpush1.msra.mxu0 0.0
  %1105 = vmatprep.subr.mxu0 0.0
  %1106 = vmatpush1.msra.mxu0 0.0
  %1107 = vmatprep.subr.mxu0 0.0
  %1108 = vmatpush1.msra.mxu0 0.0
  %1109 = vmatprep.subr.mxu0 0.0
  %1110 = vmatpush1.msra.mxu0 0.0
  %1111 = vmatprep.subr.mxu0 0.0
  %1112 = vmatpush1.msra.mxu0 0.0
  %1113 = vmatprep.subr.mxu0 0.0
  %1114 = vmatpush1.msra.mxu0 0.0
  %1115 = vmatprep.subr.mxu0 0.0
  %1116 = vmatpush1.msra.mxu0 0.0
  %1117 = vmatprep.subr.mxu0 0.0
  %1118 = vmatpush1.msra.mxu0 0.0
  %1119 = vmatprep.subr.mxu0 0.0
  %1120 = vmatpush1.msra.mxu0 0.0
  %1121 = vmatprep.mubr.f32.mxu0 0.0
  %1122 = vmatmul.mubr.f32.gmra.mrb[0].mxu0 %v1046
  %v1123 = vpop.f32.mrb[0].mxu0
  %v1124 = vadd.f32 0.0, %v1123
  %v1125 = vpop.f32.mrb[0].mxu0
  %1126 = vmatprep.mubr.f32.mxu0 0.0
  %1127 = vmatmul.mubr.f32.gmra.mrb[0].mxu0 %v1049
  %v1128 = vpop.f32.mrb[0].mxu0
  %v1129 = vadd.f32 0.0, %v1128
  %v1130 = vpop.f32.mrb[0].mxu0
  %1131 = vmatprep.mubr.f32.mxu0 0.0
  %1132 = vmatmul.mubr.f32.gmra.mrb[0].mxu0 %v1052
  %v1133 = vpop.f32.mrb[0].mxu0
  %v1134 = vadd.f32 0.0, %v1133
  %v1135 = vpop.f32.mrb[0].mxu0
  %1136 = vmatprep.mubr.f32.mxu0 0.0
  %1137 = vmatmul.mubr.f32.gmra.mrb[0].mxu0 %v1055
  %v1138 = vpop.f32.mrb[0].mxu0
  %v1139 = vadd.f32 0.0, %v1138
  %v1140 = vpop.f32.mrb[0].mxu0
  %1141 = vdwg.mxu0
  %1143 = vset.pattern.permute.xlu0 0
  %1144 = vperm.xlu0 %1143, %v1015
  %v1145 = vpop.permute.xlu0 %1144
  %1148 = vset.pattern.permute.xlu0 0
  %1149 = vperm.xlu0 %1148, %v1016
  %v1150 = vpop.permute.xlu0 %1149
  %v1152 = vadd.f32 %v1124, %v1145
  %v1153 = vadd.f32 %v1129, %v1150
  %1154 = vset.pattern.permute.xlu0 6
  %1155 = vperm.xlu0 %1154, %v1015
  %v1156 = vpop.permute.xlu0 %1155
  %1158 = vset.pattern.permute.xlu0 6
  %1159 = vperm.xlu0 %1158, %v1016
  %v1160 = vpop.permute.xlu0 %1159
  %v1162 = vadd.f32 %v1134, %v1156
  %v1163 = vadd.f32 %v1139, %v1160
  %1164 = vset.pattern.permute.xlu0 1
  %1165 = vperm.xlu0 %1164, %v1015
  %v1166 = vpop.permute.xlu0 %1165
  %1168 = vset.pattern.permute.xlu0 1
  %1169 = vperm.xlu0 %1168, %v1016
  %v1170 = vpop.permute.xlu0 %1169
  %v1172 = vmul.f32 %v1152, %v1166
  %v1173 = vmul.f32 %v1153, %v1170
  %1174 = vset.pattern.permute.xlu0 2
  %1175 = vperm.xlu0 %1174, %v1015
  %v1176 = vpop.permute.xlu0 %1175
  %1178 = vset.pattern.permute.xlu0 2
  %1179 = vperm.xlu0 %1178, %v1016
  %v1180 = vpop.permute.xlu0 %1179
  %v1182 = vadd.f32 %v1172, %v1176
  %v1183 = vadd.f32 %v1173, %v1180
  %v1184 = vmax.f32 %v1182, 0.0
  %v1185 = vmax.f32 %v1183, 0.0
  %v1186 = vld [vmem:[%s12] sm:$0xff]
  %v1187 = vld [vmem:[%s12 + $0x8] sm:$0xff]
  %1188 = vrot.lane.b32.xlu0 %v1184, 2
  %v1189 = vpop.permute.xlu0 %1188
  %1190 = vrot.lane.b32.xlu0 %v1185, 2
  %v1191 = vpop.permute.xlu0 %1190
  %v1192 = vsel %vm79, %v1189, 0.0
  %v1193 = vsel %vm79, %v1191, 0.0
  %1194 = vrot.lane.b32.xlu0 %v1184, 4
  %v1195 = vpop.permute.xlu0 %1194
  %1196 = vrot.lane.b32.xlu0 %v1185, 4
  %v1197 = vpop.permute.xlu0 %1196
  %v1198 = vsel %vm376, %v1195, 0.0
  %v1199 = vsel %vm376, %v1197, 0.0
  %1200 = vset.pattern.permute.xlu0 3
  %1201 = vperm.xlu0 %1200, %v1015
  %v1202 = vpop.permute.xlu0 %1201
  %1204 = vset.pattern.permute.xlu0 3
  %1205 = vperm.xlu0 %1204, %v1016
  %v1206 = vpop.permute.xlu0 %1205
  %v1209 = vsel %vm245, %v1186, 0
  %v1212 = vsel %vm245, %v1187, 0
  %1214 = vmatprep.subr.mxu0 0.0
  %1215 = vmatpush1.msra.mxu0 %v1184
  %1216 = vmatprep.subr.mxu0 0.0
  %1217 = vmatpush1.msra.mxu0 %v1185
  %1218 = vmatprep.subr.mxu0 0.0
  %1219 = vmatpush1.msra.mxu0 %v1192
  %1220 = vmatprep.subr.mxu0 0.0
  %1221 = vmatpush1.msra.mxu0 %v1193
  %1222 = vmatprep.subr.mxu0 0.0
  %1223 = vmatpush1.msra.mxu0 %v1198
  %1224 = vmatprep.subr.mxu0 0.0
  %1225 = vmatpush1.msra.mxu0 %v1199
  %1226 = vmatprep.subr.mxu0 0.0
  %1227 = vmatpush1.msra.mxu0 0.0
  %1228 = vmatprep.subr.mxu0 0.0
  %1229 = vmatpush1.msra.mxu0 0.0
  %1230 = vmatprep.subr.mxu0 0.0
  %1231 = vmatpush1.msra.mxu0 0.0
  %1232 = vmatprep.subr.mxu0 0.0
  %1233 = vmatpush1.msra.mxu0 0.0
  %1234 = vmatprep.subr.mxu0 0.0
  %1235 = vmatpush1.msra.mxu0 0.0
  %1236 = vmatprep.subr.mxu0 0.0
  %1237 = vmatpush1.msra.mxu0 0.0
  %1238 = vmatprep.subr.mxu0 0.0
  %1239 = vmatpush1.msra.mxu0 0.0
  %1240 = vmatprep.subr.mxu0 0.0
  %1241 = vmatpush1.msra.mxu0 0.0
  %1242 = vmatprep.subr.mxu0 0.0
  %1243 = vmatpush1.msra.mxu0 0.0
  %1244 = vmatprep.subr.mxu0 0.0
  %1245 = vmatpush1.msra.mxu0 0.0
  %1246 = vmatprep.subr.mxu0 0.0
  %1247 = vmatpush1.msra.mxu0 0.0
  %1248 = vmatprep.subr.mxu0 0.0
  %1249 = vmatpush1.msra.mxu0 0.0
  %1250 = vmatprep.subr.mxu0 0.0
  %1251 = vmatpush1.msra.mxu0 0.0
  %1252 = vmatprep.subr.mxu0 0.0
  %1253 = vmatpush1.msra.mxu0 0.0
  %1254 = vmatprep.subr.mxu0 0.0
  %1255 = vmatpush1.msra.mxu0 0.0
  %1256 = vmatprep.subr.mxu0 0.0
  %1257 = vmatpush1.msra.mxu0 0.0
  %1258 = vmatprep.subr.mxu0 0.0
  %1259 = vmatpush1.msra.mxu0 0.0
  %1260 = vmatprep.subr.mxu0 0.0
  %1261 = vmatpush1.msra.mxu0 0.0
  %1262 = vmatprep.subr.mxu0 0.0
  %1263 = vmatpush1.msra.mxu0 0.0
  %1264 = vmatprep.subr.mxu0 0.0
  %1265 = vmatpush1.msra.mxu0 0.0
  %1266 = vmatprep.subr.mxu0 0.0
  %1267 = vmatpush1.msra.mxu0 0.0
  %1268 = vmatprep.subr.mxu0 0.0
  %1269 = vmatpush1.msra.mxu0 0.0
  %1270 = vmatprep.subr.mxu0 0.0
  %1271 = vmatpush1.msra.mxu0 0.0
  %1272 = vmatprep.subr.mxu0 0.0
  %1273 = vmatpush1.msra.mxu0 0.0
  %1274 = vmatprep.subr.mxu0 0.0
  %1275 = vmatpush1.msra.mxu0 0.0
  %1276 = vmatprep.subr.mxu0 0.0
  %1277 = vmatpush1.msra.mxu0 0.0
  %1278 = vmatprep.mubr.f32.mxu0 0.0
  %1279 = vmatmul.mubr.f32.gmra.mrb[0].mxu0 %v1209
  %v1280 = vpop.f32.mrb[0].mxu0
  %v1281 = vadd.f32 %v1202, %v1280
  %v1282 = vpop.f32.mrb[0].mxu0
  %1283 = vmatprep.mubr.f32.mxu0 0.0
  %1284 = vmatmul.mubr.f32.gmra.mrb[0].mxu0 %v1212
  %v1285 = vpop.f32.mrb[0].mxu0
  %v1286 = vadd.f32 %v1206, %v1285
  %v1287 = vpop.f32.mrb[0].mxu0
  %1288 = vdwg.mxu0
  %1289 = vset.pattern.permute.xlu0 4
  %1290 = vperm.xlu0 %1289, %v1015
  %v1291 = vpop.permute.xlu0 %1290
  %1293 = vset.pattern.permute.xlu0 4
  %1294 = vperm.xlu0 %1293, %v1016
  %v1295 = vpop.permute.xlu0 %1294
  %v1297 = vmul.f32 %v1281, %v1291
  %v1298 = vmul.f32 %v1286, %v1295
  %1299 = vset.pattern.permute.xlu0 5
  %1300 = vperm.xlu0 %1299, %v1015
  %v1301 = vpop.permute.xlu0 %1300
  %1303 = vset.pattern.permute.xlu0 5
  %1304 = vperm.xlu0 %1303, %v1016
  %v1305 = vpop.permute.xlu0 %1304
  %v1307 = vadd.f32 %v1297, %v1301
  %v1308 = vadd.f32 %v1298, %v1305
  %v1309 = vmax.f32 %v1307, 0.0
  %v1310 = vmax.f32 %v1308, 0.0
  %v1311 = vadd.f32 %v1309, %v1162
  %v1312 = vadd.f32 %v1310, %v1163
  %v1313 = vmax.f32 %v1311, 0.0
  %v1314 = vmax.f32 %v1312, 0.0
  %v1315 = vld [vmem:[%s16] sm:$0xff]
  %v1316 = vld [vmem:[%s14] sm:$0xff]
  %v1317 = vld [vmem:[%s14 + $0x8] sm:$0xff]
  %1318 = vrot.lane.b32.xlu0 %v1313, 1
  %v1319 = vpop.permute.xlu0 %1318
  %1320 = vrot.lane.b32.xlu0 %v1314, 1
  %v1321 = vpop.permute.xlu0 %1320
  %v1322 = vsel %vm74, %v1319, 0.0
  %v1323 = vsel %vm74, %v1321, 0.0
  %1324 = vrot.lane.b32.xlu0 %v1313, 2
  %v1325 = vpop.permute.xlu0 %1324
  %1326 = vrot.lane.b32.xlu0 %v1314, 2
  %v1327 = vpop.permute.xlu0 %1326
  %v1328 = vsel %vm79, %v1325, 0.0
  %v1329 = vsel %vm79, %v1327, 0.0
  %v1331 = vsel %vm245, %v1316, 0
  %v1334 = vsel %vm245, %v1317, 0
  %1336 = vmatprep.subr.mxu0 0.0
  %1337 = vmatpush1.msra.mxu0 %v1313
  %1338 = vmatprep.subr.mxu0 0.0
  %1339 = vmatpush1.msra.mxu0 %v1314
  %1340 = vmatprep.subr.mxu0 0.0
  %1341 = vmatpush1.msra.mxu0 %v1322
  %1342 = vmatprep.subr.mxu0 0.0
  %1343 = vmatpush1.msra.mxu0 %v1323
  %1344 = vmatprep.subr.mxu0 0.0
  %1345 = vmatpush1.msra.mxu0 %v1328
  %1346 = vmatprep.subr.mxu0 0.0
  %1347 = vmatpush1.msra.mxu0 %v1329
  %1348 = vmatprep.subr.mxu0 0.0
  %1349 = vmatpush1.msra.mxu0 0.0
  %1350 = vmatprep.subr.mxu0 0.0
  %1351 = vmatpush1.msra.mxu0 0.0
  %1352 = vmatprep.subr.mxu0 0.0
  %1353 = vmatpush1.msra.mxu0 0.0
  %1354 = vmatprep.subr.mxu0 0.0
  %1355 = vmatpush1.msra.mxu0 0.0
  %1356 = vmatprep.subr.mxu0 0.0
  %1357 = vmatpush1.msra.mxu0 0.0
  %1358 = vmatprep.subr.mxu0 0.0
  %1359 = vmatpush1.msra.mxu0 0.0
  %1360 = vmatprep.subr.mxu0 0.0
  %1361 = vmatpush1.msra.mxu0 0.0
  %1362 = vmatprep.subr.mxu0 0.0
  %1363 = vmatpush1.msra.mxu0 0.0
  %1364 = vmatprep.subr.mxu0 0.0
  %1365 = vmatpush1.msra.mxu0 0.0
  %1366 = vmatprep.subr.mxu0 0.0
  %1367 = vmatpush1.msra.mxu0 0.0
  %1368 = vmatprep.subr.mxu0 0.0
  %1369 = vmatpush1.msra.mxu0 0.0
  %1370 = vmatprep.subr.mxu0 0.0
  %1371 = vmatpush1.msra.mxu0 0.0
  %1372 = vmatprep.subr.mxu0 0.0
  %1373 = vmatpush1.msra.mxu0 0.0
  %1374 = vmatprep.subr.mxu0 0.0
  %1375 = vmatpush1.msra.mxu0 0.0
  %1376 = vmatprep.subr.mxu0 0.0
  %1377 = vmatpush1.msra.mxu0 0.0
  %1378 = vmatprep.subr.mxu0 0.0
  %1379 = vmatpush1.msra.mxu0 0.0
  %1380 = vmatprep.subr.mxu0 0.0
  %1381 = vmatpush1.msra.mxu0 0.0
  %1382 = vmatprep.subr.mxu0 0.0
  %1383 = vmatpush1.msra.mxu0 0.0
  %1384 = vmatprep.subr.mxu0 0.0
  %1385 = vmatpush1.msra.mxu0 0.0
  %1386 = vmatprep.subr.mxu0 0.0
  %1387 = vmatpush1.msra.mxu0 0.0
  %1388 = vmatprep.subr.mxu0 0.0
  %1389 = vmatpush1.msra.mxu0 0.0
  %1390 = vmatprep.subr.mxu0 0.0
  %1391 = vmatpush1.msra.mxu0 0.0
  %1392 = vmatprep.subr.mxu0 0.0
  %1393 = vmatpush1.msra.mxu0 0.0
  %1394 = vmatprep.subr.mxu0 0.0
  %1395 = vmatpush1.msra.mxu0 0.0
  %1396 = vmatprep.subr.mxu0 0.0
  %1397 = vmatpush1.msra.mxu0 0.0
  %1398 = vmatprep.subr.mxu0 0.0
  %1399 = vmatpush1.msra.mxu0 0.0
  %1400 = vmatprep.mubr.f32.mxu0 0.0
  %1401 = vmatmul.mubr.f32.gmra.mrb[0].mxu0 %v1331
  %v1402 = vpop.f32.mrb[0].mxu0
  %v1403 = vadd.f32 0.0, %v1402
  %v1404 = vpop.f32.mrb[0].mxu0
  %1405 = vmatprep.mubr.f32.mxu0 0.0
  %1406 = vmatmul.mubr.f32.gmra.mrb[0].mxu0 %v1334
  %v1407 = vpop.f32.mrb[0].mxu0
  %v1408 = vadd.f32 0.0, %v1407
  %v1409 = vpop.f32.mrb[0].mxu0
  %1410 = vdwg.mxu0
  %1412 = vset.pattern.permute.xlu0 0
  %1413 = vperm.xlu0 %1412, %v1315
  %v1414 = vpop.permute.xlu0 %1413
  %v1416 = vadd.f32 %v1403, %v1414
  %1417 = vset.pattern.permute.xlu0 6
  %1418 = vperm.xlu0 %1417, %v1315
  %v1419 = vpop.permute.xlu0 %1418
  %v1421 = vadd.f32 %v1408, %v1419
  %1422 = vset.pattern.permute.xlu0 1
  %1423 = vperm.xlu0 %1422, %v1315
  %v1424 = vpop.permute.xlu0 %1423
  %v1426 = vmul.f32 %v1416, %v1424
  %1427 = vset.pattern.permute.xlu0 2
  %1428 = vperm.xlu0 %1427, %v1315
  %v1429 = vpop.permute.xlu0 %1428
  %v1431 = vadd.f32 %v1426, %v1429
  %v1432 = vmax.f32 %v1431, 0.0
  %v1433 = vld [vmem:[%s15] sm:$0xff]
  %1434 = vrot.lane.b32.xlu0 %v1432, 1
  %v1435 = vpop.permute.xlu0 %1434
  %v1436 = vsel %vm74, %v1435, 0.0
  %1437 = vrot.lane.b32.xlu0 %v1432, 2
  %v1438 = vpop.permute.xlu0 %1437
  %v1439 = vsel %vm79, %v1438, 0.0
  %1440 = vset.pattern.permute.xlu0 3
  %1441 = vperm.xlu0 %1440, %v1315
  %v1442 = vpop.permute.xlu0 %1441
  %v1445 = vsel %vm81, %v1433, 0
  %1447 = vmatprep.subr.mxu0 0.0
  %1448 = vmatpush1.msra.mxu0 %v1432
  %1449 = vmatprep.subr.mxu0 0.0
  %1450 = vmatpush1.msra.mxu0 %v1436
  %1451 = vmatprep.subr.mxu0 0.0
  %1452 = vmatpush1.msra.mxu0 %v1439
  %1453 = vmatprep.subr.mxu0 0.0
  %1454 = vmatpush1.msra.mxu0 0.0
  %1455 = vmatprep.subr.mxu0 0.0
  %1456 = vmatpush1.msra.mxu0 0.0
  %1457 = vmatprep.subr.mxu0 0.0
  %1458 = vmatpush1.msra.mxu0 0.0
  %1459 = vmatprep.subr.mxu0 0.0
  %1460 = vmatpush1.msra.mxu0 0.0
  %1461 = vmatprep.subr.mxu0 0.0
  %1462 = vmatpush1.msra.mxu0 0.0
  %1463 = vmatprep.subr.mxu0 0.0
  %1464 = vmatpush1.msra.mxu0 0.0
  %1465 = vmatprep.subr.mxu0 0.0
  %1466 = vmatpush1.msra.mxu0 0.0
  %1467 = vmatprep.subr.mxu0 0.0
  %1468 = vmatpush1.msra.mxu0 0.0
  %1469 = vmatprep.subr.mxu0 0.0
  %1470 = vmatpush1.msra.mxu0 0.0
  %1471 = vmatprep.subr.mxu0 0.0
  %1472 = vmatpush1.msra.mxu0 0.0
  %1473 = vmatprep.subr.mxu0 0.0
  %1474 = vmatpush1.msra.mxu0 0.0
  %1475 = vmatprep.subr.mxu0 0.0
  %1476 = vmatpush1.msra.mxu0 0.0
  %1477 = vmatprep.subr.mxu0 0.0
  %1478 = vmatpush1.msra.mxu0 0.0
  %1479 = vmatprep.subr.mxu0 0.0
  %1480 = vmatpush1.msra.mxu0 0.0
  %1481 = vmatprep.subr.mxu0 0.0
  %1482 = vmatpush1.msra.mxu0 0.0
  %1483 = vmatprep.subr.mxu0 0.0
  %1484 = vmatpush1.msra.mxu0 0.0
  %1485 = vmatprep.subr.mxu0 0.0
  %1486 = vmatpush1.msra.mxu0 0.0
  %1487 = vmatprep.subr.mxu0 0.0
  %1488 = vmatpush1.msra.mxu0 0.0
  %1489 = vmatprep.subr.mxu0 0.0
  %1490 = vmatpush1.msra.mxu0 0.0
  %1491 = vmatprep.subr.mxu0 0.0
  %1492 = vmatpush1.msra.mxu0 0.0
  %1493 = vmatprep.subr.mxu0 0.0
  %1494 = vmatpush1.msra.mxu0 0.0
  %1495 = vmatprep.subr.mxu0 0.0
  %1496 = vmatpush1.msra.mxu0 0.0
  %1497 = vmatprep.subr.mxu0 0.0
  %1498 = vmatpush1.msra.mxu0 0.0
  %1499 = vmatprep.subr.mxu0 0.0
  %1500 = vmatpush1.msra.mxu0 0.0
  %1501 = vmatprep.subr.mxu0 0.0
  %1502 = vmatpush1.msra.mxu0 0.0
  %1503 = vmatprep.subr.mxu0 0.0
  %1504 = vmatpush1.msra.mxu0 0.0
  %1505 = vmatprep.subr.mxu0 0.0
  %1506 = vmatpush1.msra.mxu0 0.0
  %1507 = vmatprep.subr.mxu0 0.0
  %1508 = vmatpush1.msra.mxu0 0.0
  %1509 = vmatprep.subr.mxu0 0.0
  %1510 = vmatpush1.msra.mxu0 0.0
  %1511 = vmatprep.mubr.f32.mxu0 0.0
  %1512 = vmatmul.mubr.f32.gmra.mrb[0].mxu0 %v1445
  %v1513 = vpop.f32.mrb[0].mxu0
  %v1514 = vadd.f32 %v1442, %v1513
  %v1515 = vpop.f32.mrb[0].mxu0
  %1516 = vdwg.mxu0
  %1517 = vset.pattern.permute.xlu0 4
  %1518 = vperm.xlu0 %1517, %v1315
  %v1519 = vpop.permute.xlu0 %1518
  %v1521 = vmul.f32 %v1514, %v1519
  %1522 = vset.pattern.permute.xlu0 5
  %1523 = vperm.xlu0 %1522, %v1315
  %v1524 = vpop.permute.xlu0 %1523
  %v1526 = vadd.f32 %v1521, %v1524
  %v1527 = vmax.f32 %v1526, 0.0
  %v1528 = vadd.f32 %v1527, %v1421
  %v1529 = vmax.f32 %v1528, 0.0
  %1530 = vst [vmem:[%s17] sm:$0xff] %v1529
  // Predicated region
  $region70: #{tcnn_autoencoder_forward_packed.1} parent=0 // pred_check
    _
  $region71: #{tcnn_autoencoder_forward_packed.1} parent=0 // pred_check_branch
    %1532 = sbr.rel (0) target = $region73
  $region72: #{tcnn_autoencoder_forward_packed.1} parent=0 // pred_region
    _
  $region73: #{tcnn_autoencoder_forward_packed.1} parent=0 // pred_fallthru
    _
  // Predicated region
  $region74: #{tcnn_autoencoder_forward_packed.1} parent=0 // pred_check
    _
  $region75: #{tcnn_autoencoder_forward_packed.1} parent=0 // pred_check_branch
    %1534 = sbr.rel (0) target = $region77
  $region76: #{tcnn_autoencoder_forward_packed.1} parent=0 // pred_region
    _
  $region77: #{tcnn_autoencoder_forward_packed.1} parent=0 // pred_fallthru
    _
  // Predicated region
  $region78: #{tcnn_autoencoder_forward_packed.1} parent=0 // pred_check
    _
  $region79: #{tcnn_autoencoder_forward_packed.1} parent=0 // pred_check_branch
    %1536 = sbr.rel (0) target = $region81
  $region80: #{tcnn_autoencoder_forward_packed.1} parent=0 // pred_region
    _
  $region81: #{tcnn_autoencoder_forward_packed.1} parent=0 // pred_fallthru
    _
  // Predicated region
  $region82: #{tcnn_autoencoder_forward_packed.1} parent=0 // pred_check
    _
  $region83: #{tcnn_autoencoder_forward_packed.1} parent=0 // pred_check_branch
    %1538 = sbr.rel (0) target = $region85
  $region84: #{tcnn_autoencoder_forward_packed.1} parent=0 // pred_region
    _
  $region85: #{tcnn_autoencoder_forward_packed.1} parent=0 // pred_fallthru
    _

</llo_original>
